<compile_context>
chip_gen: v5e
topology: v5e:2x2
jax: 0.10.0
libtpu: 0.0.40
codegen_flags: <defaults>
</compile_context>

<pallas_src>
import jax
import jax.numpy as jnp
from jax.experimental import pallas as pl
from jax.experimental.pallas import tpu as pltpu

LANE = 128                        # pad Cout to this so conv-output stores are lane-dense
VMEM_LIMIT = 48 * 1024 * 1024     # > 32 MiB default (v5e/v6e), <= ~48 MiB v7x budget


def _round_up(x, m):
    return (x + m - 1) // m * m


def _pick_rows(total, row_len, target_sublanes=512, min_steps=2):
    """Rows-per-step for the memory-bound pool kernel: cover >= ~target_sublanes sublane rows
    per grid step (amortize ~0.35us/step), but keep >= min_steps steps so a v7x megacore can
    split the parallel grid axis.  Returns a divisor of `total`."""
    want = max(1, target_sublanes // max(1, row_len))
    if total >= 2 * min_steps:
        want = min(want, total // min_steps)
    want = max(1, min(want, total))
    t = want
    while total % t:
        t -= 1
    return t


def _conv_stats_kernel(x_ref, w_ref, o_ref, s_ref):
    # x_ref: (1, H+2, W+2, Cin) spatially padded NHWC image (halo included in the block).
    # w_ref: (9, Cin, Cpad) conv taps, tap index = kh*3 + kw (grid-invariant, stays resident).
    # o_ref: (1, H*W, Cpad) conv output for this image.
    # s_ref: (1, 1, 2*Cpad) per-image partial BN stats: lanes [0:Cpad)=sum, [Cpad:2Cpad)=sumsq.
    _, hp, wp, cin = x_ref.shape
    h, w = hp - 2, wp - 2
    cpad = o_ref.shape[-1]
    xp = x_ref[0]                                       # (H+2, W+2, Cin)

    # Implicit im2col: 9 shifted views of the padded image, each contracted over Cin on the
    # MXU and accumulated in f32.  No im2col buffer ever touches HBM, and the contraction dim
    # is left at its true size (Mosaic pads K<128 internally).
    acc = jnp.zeros((h * w, cpad), jnp.float32)
    for kh in range(3):
        for kw in range(3):
            patch = xp[kh:kh + h, kw:kw + w, :].reshape(h * w, cin)
            acc = acc + jnp.dot(patch, w_ref[kh * 3 + kw],
                                preferred_element_type=jnp.float32)
    o_ref[0] = acc

    ssum = jnp.sum(acc, axis=0, keepdims=True)          # (1, Cpad)
    ssq = jnp.sum(acc * acc, axis=0, keepdims=True)     # (1, Cpad)
    s_ref[0] = jnp.concatenate([ssum, ssq], axis=-1)    # single lane-dense store


def _bn_relu_pool_kernel(x_ref, sc_ref, sh_ref, o_ref):
    # x_ref: (trow, 2, OW, 2*Cpad): dim 1 = even/odd conv rows; lanes [0:Cpad)=even columns,
    # [Cpad:2Cpad)=odd columns.  sc/sh: (1, 2*Cpad) BN scale/shift duplicated per lane half.
    # o_ref: (trow, OW, Cpad) pooled output.
    cpad = o_ref.shape[-1]
    sc = sc_ref[...]
    sh = sh_ref[...]
    a = x_ref[...]
    ye = a[:, 0] * sc + sh                            # affine before max (scale may be < 0)
    yo = a[:, 1] * sc + sh
    v = jnp.maximum(ye, yo)                           # vertical (row-pair) max
    m = jnp.maximum(v[..., :cpad], v[..., cpad:])     # horizontal max, 128-aligned lane split
    o_ref[...] = jnp.maximum(m, 0.0)                  # ReLU commutes with max


def conv2d_block_forward(x, w, b, gamma, beta, *, pooling=2, eps=1e-5):
    """maxpool2(relu(batchnorm(conv3x3(x)))), training-mode BN batch statistics."""
    del b  # per-channel conv bias is exactly cancelled by training-mode BN mean subtraction
    N, Cin, H, W = x.shape
    Cout, Cin_w, KH, KW = w.shape
    assert Cin == Cin_w and KH == KW == 3, "kernel specialized for 3x3, padding=1"
    assert pooling == 2, "kernel specialized for MaxPool2d(2)"
    assert H % pooling == 0 and W % pooling == 0
    pad = KH // 2
    Cpad = _round_up(Cout, LANE)
    M = N * H * W

    # NHWC + spatial zero-pad (tiny input; a real pipeline would keep NHWC end-to-end).
    x_nhwc = jnp.transpose(x, (0, 2, 3, 1))
    xp = jnp.pad(x_nhwc, ((0, 0), (pad, pad), (pad, pad), (0, 0)))

    # Conv taps as (9, Cin, Cpad): tap kh*3+kw holds w[:, :, kh, kw].T, Cout padded to lanes.
    w_taps = jnp.pad(jnp.transpose(w, (2, 3, 1, 0)).reshape(KH * KW, Cin, Cout),
                     ((0, 0), (0, 0), (0, Cpad - Cout)))

    # ---- kernel 1: implicit-im2col conv + per-image partial BN stats (grid over batch) ----
    conv_out, stats = pl.pallas_call(
        _conv_stats_kernel,
        out_shape=(jax.ShapeDtypeStruct((N, H * W, Cpad), jnp.float32),
                   jax.ShapeDtypeStruct((N, 1, 2 * Cpad), jnp.float32)),
        grid=(N,),
        in_specs=[
            pl.BlockSpec((1, H + 2 * pad, W + 2 * pad, Cin), lambda n: (n, 0, 0, 0)),
            pl.BlockSpec((KH * KW, Cin, Cpad), lambda n: (0, 0, 0)),
        ],
        out_specs=(
            pl.BlockSpec((1, H * W, Cpad), lambda n: (n, 0, 0)),
            pl.BlockSpec((1, 1, 2 * Cpad), lambda n: (n, 0, 0)),
        ),
        compiler_params=pltpu.CompilerParams(
            dimension_semantics=("parallel",),
            vmem_limit_bytes=VMEM_LIMIT),
    )(xp, w_taps)

    # ---- combine tiny per-image partials into BN scale/shift (biased batch variance) ----
    s = jnp.sum(stats, axis=0)[0]                     # (2*Cpad,)
    mean = s[:Cpad] / M
    var = s[Cpad:] / M - mean * mean                  # TODO(synk): Welford merge if M is huge
    gamma_p = jnp.pad(gamma, (0, Cpad - Cout))
    beta_p = jnp.pad(beta, (0, Cpad - Cout))
    scale = gamma_p * jax.lax.rsqrt(var + eps)
    shift = beta_p - mean * scale
    scale2 = jnp.tile(scale, 2).reshape(1, 2 * Cpad)  # duplicate for (even-col | odd-col) halves
    shift2 = jnp.tile(shift, 2).reshape(1, 2 * Cpad)

    # ---- kernel 2: fused BN + ReLU + 2x2 max-pool, tiled over pooled row pairs ----
    OH, OW = H // pooling, W // pooling
    NOH = N * OH
    # Free (contiguous) reshape: row m=(n,h,w) -> (n*OH+oh, h%2, ow, (w%2)*Cpad + c).
    a4 = conv_out.reshape(NOH, pooling, OW, pooling * Cpad)
    trow = _pick_rows(NOH, OW)
    n_rb = NOH // trow

    pooled = pl.pallas_call(
        _bn_relu_pool_kernel,
        out_shape=jax.ShapeDtypeStruct((NOH, OW, Cpad), jnp.float32),
        grid=(n_rb,),
        in_specs=[
            pl.BlockSpec((trow, pooling, OW, pooling * Cpad), lambda i: (i, 0, 0, 0)),
            pl.BlockSpec((1, pooling * Cpad), lambda i: (0, 0)),
            pl.BlockSpec((1, pooling * Cpad), lambda i: (0, 0)),
        ],
        out_specs=pl.BlockSpec((trow, OW, Cpad), lambda i: (i, 0, 0)),
        compiler_params=pltpu.CompilerParams(
            dimension_semantics=("parallel",),
            vmem_limit_bytes=VMEM_LIMIT),
    )(a4, scale2, shift2)

    out = pooled.reshape(N, OH, OW, Cpad)[..., :Cout]
    # TODO(synk): an NHWC consumer could skip this slice+transpose (one extra HBM round trip).
    return jnp.transpose(out, (0, 3, 1, 2))           # back to NCHW to match the module


def _reference(x, w, b, gamma, beta, pooling=2, eps=1e-5):
    conv = jax.lax.conv_general_dilated(
        x, w, window_strides=(1, 1), padding="SAME",
        dimension_numbers=("NCHW", "OIHW", "NCHW"))
    conv = conv + b.reshape(1, -1, 1, 1)
    mu = jnp.mean(conv, axis=(0, 2, 3), keepdims=True)
    var = jnp.mean((conv - mu) ** 2, axis=(0, 2, 3), keepdims=True)
    y = (conv - mu) / jnp.sqrt(var + eps) * gamma.reshape(1, -1, 1, 1) + beta.reshape(1, -1, 1, 1)
    y = jnp.maximum(y, 0.0)
    N, C, H, W = y.shape
    y = y.reshape(N, C, H // pooling, pooling, W // pooling, pooling)
    return jnp.max(y, axis=(3, 5))


if __name__ == "__main__":
    key = jax.random.PRNGKey(0)
    k1, k2, k3, k4, k5 = jax.random.split(key, 5)

    # Small shapes consistent with the module: NCHW input, 3x3 conv pad=1, pool 2.
    N, Cin, H, W = 2, 4, 16, 16
    Cout = 8

    x = jax.random.normal(k1, (N, Cin, H, W), jnp.float32)
    w = 0.1 * jax.random.normal(k2, (Cout, Cin, 3, 3), jnp.float32)   # nn.Conv2d weight
    b = 0.1 * jax.random.normal(k3, (Cout,), jnp.float32)             # nn.Conv2d bias
    gamma = 1.0 + 0.1 * jax.random.normal(k4, (Cout,), jnp.float32)   # BatchNorm2d weight
    beta = 0.1 * jax.random.normal(k5, (Cout,), jnp.float32)          # BatchNorm2d bias

    fwd = jax.jit(conv2d_block_forward)
    out = jax.block_until_ready(fwd(x, w, b, gamma, beta))

    ref = _reference(x, w, b, gamma, beta)
    assert out.shape == (N, Cout, H // 2, W // 2), out.shape
    err = float(jnp.max(jnp.abs(out - ref)))
    assert jnp.allclose(out, ref, atol=1e-4, rtol=1e-4), err

    print("KERNEL_OK")
</pallas_src>

<mosaic_0001>
module attributes {stable_mosaic.version = 11 : i64} {
  func.func @_conv_stats_kernel(%arg0: i32, %arg1: memref<1x18x18x4xf32, #tpu.memory_space<vmem>>, %arg2: memref<9x4x128xf32, #tpu.memory_space<vmem>>, %arg3: memref<1x256x128xf32, #tpu.memory_space<vmem>>, %arg4: memref<1x1x256xf32, #tpu.memory_space<vmem>>) attributes {dimension_semantics = [#tpu.dimension_semantics<parallel>], iteration_bounds = array<i64: 2>, scalar_prefetch = 0 : i64, scratch_operands = 0 : i64, tpu.core_type = #tpu.core_type<tc>, window_params = [{transform_indices = @transform_0, window_bounds = array<i64: 1, 18, 18, 4>}, {pipeline_mode = #tpu.pipeline_mode<synchronous>, transform_indices = @transform_1, window_bounds = array<i64: 9, 4, 128>}, {transform_indices = @transform_2, window_bounds = array<i64: 1, 256, 128>}, {transform_indices = @transform_3, window_bounds = array<i64: 1, 1, 256>}]} {
    %c0 = arith.constant 0 : index
    %c0_0 = arith.constant 0 : index
    %c0_1 = arith.constant 0 : index
    %c0_2 = arith.constant 0 : index
    %0 = vector.load %arg1[%c0, %c0_0, %c0_1, %c0_2] : memref<1x18x18x4xf32, #tpu.memory_space<vmem>>, vector<1x18x18x4xf32>
    %1 = vector.shape_cast %0 : vector<1x18x18x4xf32> to vector<18x18x4xf32>
    %cst = arith.constant 0.000000e+00 : f32
    %2 = vector.broadcast %cst : f32 to vector<256x128xf32>
    %3 = vector.extract_strided_slice %1 {offsets = [0, 0, 0], sizes = [16, 16, 4], strides = [1, 1, 1]} : vector<18x18x4xf32> to vector<16x16x4xf32>
    %4 = vector.shape_cast %3 : vector<16x16x4xf32> to vector<256x4xf32>
    %c0_3 = arith.constant 0 : index
    %c0_4 = arith.constant 0 : index
    %c0_5 = arith.constant 0 : index
    %5 = vector.load %arg2[%c0_3, %c0_4, %c0_5] : memref<9x4x128xf32, #tpu.memory_space<vmem>>, vector<1x4x128xf32>
    %6 = vector.shape_cast %5 : vector<1x4x128xf32> to vector<4x128xf32>
    %cst_6 = arith.constant dense<0.000000e+00> : vector<256x128xf32>
    %7 = tpu.matmul %4, %6, %cst_6 {dimension_numbers = #tpu.dot_dimension_numbers<[1], [0], [0], [1], [0, 0, 1, 1], [], []>} : vector<256x4xf32>, vector<4x128xf32>, vector<256x128xf32> -> vector<256x128xf32>
    %8 = arith.addf %2, %7 : vector<256x128xf32>
    %9 = vector.extract_strided_slice %1 {offsets = [0, 1, 0], sizes = [16, 16, 4], strides = [1, 1, 1]} : vector<18x18x4xf32> to vector<16x16x4xf32>
    %10 = vector.shape_cast %9 : vector<16x16x4xf32> to vector<256x4xf32>
    %c1 = arith.constant 1 : index
    %c0_7 = arith.constant 0 : index
    %c0_8 = arith.constant 0 : index
    %11 = vector.load %arg2[%c1, %c0_7, %c0_8] : memref<9x4x128xf32, #tpu.memory_space<vmem>>, vector<1x4x128xf32>
    %12 = vector.shape_cast %11 : vector<1x4x128xf32> to vector<4x128xf32>
    %cst_9 = arith.constant dense<0.000000e+00> : vector<256x128xf32>
    %13 = tpu.matmul %10, %12, %cst_9 {dimension_numbers = #tpu.dot_dimension_numbers<[1], [0], [0], [1], [0, 0, 1, 1], [], []>} : vector<256x4xf32>, vector<4x128xf32>, vector<256x128xf32> -> vector<256x128xf32>
    %14 = arith.addf %8, %13 : vector<256x128xf32>
    %15 = vector.extract_strided_slice %1 {offsets = [0, 2, 0], sizes = [16, 16, 4], strides = [1, 1, 1]} : vector<18x18x4xf32> to vector<16x16x4xf32>
    %16 = vector.shape_cast %15 : vector<16x16x4xf32> to vector<256x4xf32>
    %c2 = arith.constant 2 : index
    %c0_10 = arith.constant 0 : index
    %c0_11 = arith.constant 0 : index
    %17 = vector.load %arg2[%c2, %c0_10, %c0_11] : memref<9x4x128xf32, #tpu.memory_space<vmem>>, vector<1x4x128xf32>
    %18 = vector.shape_cast %17 : vector<1x4x128xf32> to vector<4x128xf32>
    %cst_12 = arith.constant dense<0.000000e+00> : vector<256x128xf32>
    %19 = tpu.matmul %16, %18, %cst_12 {dimension_numbers = #tpu.dot_dimension_numbers<[1], [0], [0], [1], [0, 0, 1, 1], [], []>} : vector<256x4xf32>, vector<4x128xf32>, vector<256x128xf32> -> vector<256x128xf32>
    %20 = arith.addf %14, %19 : vector<256x128xf32>
    %21 = vector.extract_strided_slice %1 {offsets = [1, 0, 0], sizes = [16, 16, 4], strides = [1, 1, 1]} : vector<18x18x4xf32> to vector<16x16x4xf32>
    %22 = vector.shape_cast %21 : vector<16x16x4xf32> to vector<256x4xf32>
    %c3 = arith.constant 3 : index
    %c0_13 = arith.constant 0 : index
    %c0_14 = arith.constant 0 : index
    %23 = vector.load %arg2[%c3, %c0_13, %c0_14] : memref<9x4x128xf32, #tpu.memory_space<vmem>>, vector<1x4x128xf32>
    %24 = vector.shape_cast %23 : vector<1x4x128xf32> to vector<4x128xf32>
    %cst_15 = arith.constant dense<0.000000e+00> : vector<256x128xf32>
    %25 = tpu.matmul %22, %24, %cst_15 {dimension_numbers = #tpu.dot_dimension_numbers<[1], [0], [0], [1], [0, 0, 1, 1], [], []>} : vector<256x4xf32>, vector<4x128xf32>, vector<256x128xf32> -> vector<256x128xf32>
    %26 = arith.addf %20, %25 : vector<256x128xf32>
    %27 = vector.extract_strided_slice %1 {offsets = [1, 1, 0], sizes = [16, 16, 4], strides = [1, 1, 1]} : vector<18x18x4xf32> to vector<16x16x4xf32>
    %28 = vector.shape_cast %27 : vector<16x16x4xf32> to vector<256x4xf32>
    %c4 = arith.constant 4 : index
    %c0_16 = arith.constant 0 : index
    %c0_17 = arith.constant 0 : index
    %29 = vector.load %arg2[%c4, %c0_16, %c0_17] : memref<9x4x128xf32, #tpu.memory_space<vmem>>, vector<1x4x128xf32>
    %30 = vector.shape_cast %29 : vector<1x4x128xf32> to vector<4x128xf32>
    %cst_18 = arith.constant dense<0.000000e+00> : vector<256x128xf32>
    %31 = tpu.matmul %28, %30, %cst_18 {dimension_numbers = #tpu.dot_dimension_numbers<[1], [0], [0], [1], [0, 0, 1, 1], [], []>} : vector<256x4xf32>, vector<4x128xf32>, vector<256x128xf32> -> vector<256x128xf32>
    %32 = arith.addf %26, %31 : vector<256x128xf32>
    %33 = vector.extract_strided_slice %1 {offsets = [1, 2, 0], sizes = [16, 16, 4], strides = [1, 1, 1]} : vector<18x18x4xf32> to vector<16x16x4xf32>
    %34 = vector.shape_cast %33 : vector<16x16x4xf32> to vector<256x4xf32>
    %c5 = arith.constant 5 : index
    %c0_19 = arith.constant 0 : index
    %c0_20 = arith.constant 0 : index
    %35 = vector.load %arg2[%c5, %c0_19, %c0_20] : memref<9x4x128xf32, #tpu.memory_space<vmem>>, vector<1x4x128xf32>
    %36 = vector.shape_cast %35 : vector<1x4x128xf32> to vector<4x128xf32>
    %cst_21 = arith.constant dense<0.000000e+00> : vector<256x128xf32>
    %37 = tpu.matmul %34, %36, %cst_21 {dimension_numbers = #tpu.dot_dimension_numbers<[1], [0], [0], [1], [0, 0, 1, 1], [], []>} : vector<256x4xf32>, vector<4x128xf32>, vector<256x128xf32> -> vector<256x128xf32>
    %38 = arith.addf %32, %37 : vector<256x128xf32>
    %39 = vector.extract_strided_slice %1 {offsets = [2, 0, 0], sizes = [16, 16, 4], strides = [1, 1, 1]} : vector<18x18x4xf32> to vector<16x16x4xf32>
    %40 = vector.shape_cast %39 : vector<16x16x4xf32> to vector<256x4xf32>
    %c6 = arith.constant 6 : index
    %c0_22 = arith.constant 0 : index
    %c0_23 = arith.constant 0 : index
    %41 = vector.load %arg2[%c6, %c0_22, %c0_23] : memref<9x4x128xf32, #tpu.memory_space<vmem>>, vector<1x4x128xf32>
    %42 = vector.shape_cast %41 : vector<1x4x128xf32> to vector<4x128xf32>
    %cst_24 = arith.constant dense<0.000000e+00> : vector<256x128xf32>
    %43 = tpu.matmul %40, %42, %cst_24 {dimension_numbers = #tpu.dot_dimension_numbers<[1], [0], [0], [1], [0, 0, 1, 1], [], []>} : vector<256x4xf32>, vector<4x128xf32>, vector<256x128xf32> -> vector<256x128xf32>
    %44 = arith.addf %38, %43 : vector<256x128xf32>
    %45 = vector.extract_strided_slice %1 {offsets = [2, 1, 0], sizes = [16, 16, 4], strides = [1, 1, 1]} : vector<18x18x4xf32> to vector<16x16x4xf32>
    %46 = vector.shape_cast %45 : vector<16x16x4xf32> to vector<256x4xf32>
    %c7 = arith.constant 7 : index
    %c0_25 = arith.constant 0 : index
    %c0_26 = arith.constant 0 : index
    %47 = vector.load %arg2[%c7, %c0_25, %c0_26] : memref<9x4x128xf32, #tpu.memory_space<vmem>>, vector<1x4x128xf32>
    %48 = vector.shape_cast %47 : vector<1x4x128xf32> to vector<4x128xf32>
    %cst_27 = arith.constant dense<0.000000e+00> : vector<256x128xf32>
    %49 = tpu.matmul %46, %48, %cst_27 {dimension_numbers = #tpu.dot_dimension_numbers<[1], [0], [0], [1], [0, 0, 1, 1], [], []>} : vector<256x4xf32>, vector<4x128xf32>, vector<256x128xf32> -> vector<256x128xf32>
    %50 = arith.addf %44, %49 : vector<256x128xf32>
    %51 = vector.extract_strided_slice %1 {offsets = [2, 2, 0], sizes = [16, 16, 4], strides = [1, 1, 1]} : vector<18x18x4xf32> to vector<16x16x4xf32>
    %52 = vector.shape_cast %51 : vector<16x16x4xf32> to vector<256x4xf32>
    %c8 = arith.constant 8 : index
    %c0_28 = arith.constant 0 : index
    %c0_29 = arith.constant 0 : index
    %53 = vector.load %arg2[%c8, %c0_28, %c0_29] : memref<9x4x128xf32, #tpu.memory_space<vmem>>, vector<1x4x128xf32>
    %54 = vector.shape_cast %53 : vector<1x4x128xf32> to vector<4x128xf32>
    %cst_30 = arith.constant dense<0.000000e+00> : vector<256x128xf32>
    %55 = tpu.matmul %52, %54, %cst_30 {dimension_numbers = #tpu.dot_dimension_numbers<[1], [0], [0], [1], [0, 0, 1, 1], [], []>} : vector<256x4xf32>, vector<4x128xf32>, vector<256x128xf32> -> vector<256x128xf32>
    %56 = arith.addf %50, %55 : vector<256x128xf32>
    %c0_31 = arith.constant 0 : index
    %c0_32 = arith.constant 0 : index
    %c0_33 = arith.constant 0 : index
    %57 = vector.load %arg3[%c0_31, %c0_32, %c0_33] : memref<1x256x128xf32, #tpu.memory_space<vmem>>, vector<1x256x128xf32>
    %58 = vector.shape_cast %57 : vector<1x256x128xf32> to vector<256x128xf32>
    %59 = vector.shape_cast %56 : vector<256x128xf32> to vector<1x256x128xf32>
    tpu.vector_store %arg3[%c0_31, %c0_32, %c0_33], %59 {strides = array<i32>} : memref<1x256x128xf32, #tpu.memory_space<vmem>>, vector<1x256x128xf32>,
    %cst_34 = arith.constant dense<0.000000e+00> : vector<128xf32>
    %60 = vector.multi_reduction <add>, %56, %cst_34 [0] : vector<256x128xf32> to vector<128xf32>
    %61 = vector.shape_cast %60 : vector<128xf32> to vector<1x128xf32>
    %62 = arith.mulf %56, %56 : vector<256x128xf32>
    %cst_35 = arith.constant dense<0.000000e+00> : vector<128xf32>
    %63 = vector.multi_reduction <add>, %62, %cst_35 [0] : vector<256x128xf32> to vector<128xf32>
    %64 = vector.shape_cast %63 : vector<128xf32> to vector<1x128xf32>
    %65 = tpu.concatenate %61, %64 in 1 : vector<1x128xf32>, vector<1x128xf32> -> vector<1x256xf32>
    %c0_36 = arith.constant 0 : index
    %c0_37 = arith.constant 0 : index
    %c0_38 = arith.constant 0 : index
    %66 = vector.load %arg4[%c0_36, %c0_37, %c0_38] : memref<1x1x256xf32, #tpu.memory_space<vmem>>, vector<1x1x256xf32>
    %67 = vector.shape_cast %66 : vector<1x1x256xf32> to vector<1x256xf32>
    %68 = vector.shape_cast %65 : vector<1x256xf32> to vector<1x1x256xf32>
    tpu.vector_store %arg4[%c0_36, %c0_37, %c0_38], %68 {strides = array<i32>} : memref<1x1x256xf32, #tpu.memory_space<vmem>>, vector<1x1x256xf32>,
    return
  }
  func.func @transform_0(%arg0: i32) -> (i32, i32, i32, i32) {
    %c0_i32 = arith.constant 0 : i32
    %c0_i32_0 = arith.constant 0 : i32
    %c0_i32_1 = arith.constant 0 : i32
    %c0_i32_2 = arith.constant 0 : i32
    return %arg0, %c0_i32, %c0_i32_0, %c0_i32_1 : i32, i32, i32, i32
  }
  func.func @transform_1(%arg0: i32) -> (i32, i32, i32) {
    %c0_i32 = arith.constant 0 : i32
    %c0_i32_0 = arith.constant 0 : i32
    %c0_i32_1 = arith.constant 0 : i32
    %c0_i32_2 = arith.constant 0 : i32
    return %c0_i32, %c0_i32_0, %c0_i32_1 : i32, i32, i32
  }
  func.func @transform_2(%arg0: i32) -> (i32, i32, i32) {
    %c0_i32 = arith.constant 0 : i32
    %c0_i32_0 = arith.constant 0 : i32
    %c0_i32_1 = arith.constant 0 : i32
    return %arg0, %c0_i32, %c0_i32_0 : i32, i32, i32
  }
  func.func @transform_3(%arg0: i32) -> (i32, i32, i32) {
    %c0_i32 = arith.constant 0 : i32
    %c0_i32_0 = arith.constant 0 : i32
    %c0_i32_1 = arith.constant 0 : i32
    return %arg0, %c0_i32, %c0_i32_0 : i32, i32, i32
  }
}

module attributes {stable_mosaic.version = 11 : i64} {
  func.func @_bn_relu_pool_kernel(%arg0: i32, %arg1: memref<8x2x8x256xf32, #tpu.memory_space<vmem>>, %arg2: memref<1x256xf32, #tpu.memory_space<vmem>>, %arg3: memref<1x256xf32, #tpu.memory_space<vmem>>, %arg4: memref<8x8x128xf32, #tpu.memory_space<vmem>>) attributes {dimension_semantics = [#tpu.dimension_semantics<parallel>], iteration_bounds = array<i64: 2>, scalar_prefetch = 0 : i64, scratch_operands = 0 : i64, tpu.core_type = #tpu.core_type<tc>, window_params = [{transform_indices = @transform_0, window_bounds = array<i64: 8, 2, 8, 256>}, {pipeline_mode = #tpu.pipeline_mode<synchronous>, transform_indices = @transform_1, window_bounds = array<i64: 1, 256>}, {pipeline_mode = #tpu.pipeline_mode<synchronous>, transform_indices = @transform_2, window_bounds = array<i64: 1, 256>}, {transform_indices = @transform_3, window_bounds = array<i64: 8, 8, 128>}]} {
    %c0 = arith.constant 0 : index
    %c0_0 = arith.constant 0 : index
    %0 = vector.load %arg2[%c0, %c0_0] : memref<1x256xf32, #tpu.memory_space<vmem>>, vector<1x256xf32>
    %c0_1 = arith.constant 0 : index
    %c0_2 = arith.constant 0 : index
    %1 = vector.load %arg3[%c0_1, %c0_2] : memref<1x256xf32, #tpu.memory_space<vmem>>, vector<1x256xf32>
    %c0_3 = arith.constant 0 : index
    %c0_4 = arith.constant 0 : index
    %c0_5 = arith.constant 0 : index
    %c0_6 = arith.constant 0 : index
    %2 = vector.load %arg1[%c0_3, %c0_4, %c0_5, %c0_6] : memref<8x2x8x256xf32, #tpu.memory_space<vmem>>, vector<8x2x8x256xf32>
    %3 = vector.extract_strided_slice %2 {offsets = [0, 0, 0, 0], sizes = [8, 1, 8, 256], strides = [1, 1, 1, 1]} : vector<8x2x8x256xf32> to vector<8x1x8x256xf32>
    %4 = vector.shape_cast %3 : vector<8x1x8x256xf32> to vector<8x8x256xf32>
    %5 = vector.shape_cast %0 : vector<1x256xf32> to vector<1x1x256xf32>
    %6 = vector.broadcast %5 : vector<1x1x256xf32> to vector<8x8x256xf32>
    %7 = arith.mulf %4, %6 : vector<8x8x256xf32>
    %8 = vector.shape_cast %1 : vector<1x256xf32> to vector<1x1x256xf32>
    %9 = vector.broadcast %8 : vector<1x1x256xf32> to vector<8x8x256xf32>
    %10 = arith.addf %7, %9 : vector<8x8x256xf32>
    %11 = vector.extract_strided_slice %2 {offsets = [0, 1, 0, 0], sizes = [8, 1, 8, 256], strides = [1, 1, 1, 1]} : vector<8x2x8x256xf32> to vector<8x1x8x256xf32>
    %12 = vector.shape_cast %11 : vector<8x1x8x256xf32> to vector<8x8x256xf32>
    %13 = vector.shape_cast %0 : vector<1x256xf32> to vector<1x1x256xf32>
    %14 = vector.broadcast %13 : vector<1x1x256xf32> to vector<8x8x256xf32>
    %15 = arith.mulf %12, %14 : vector<8x8x256xf32>
    %16 = vector.shape_cast %1 : vector<1x256xf32> to vector<1x1x256xf32>
    %17 = vector.broadcast %16 : vector<1x1x256xf32> to vector<8x8x256xf32>
    %18 = arith.addf %15, %17 : vector<8x8x256xf32>
    %19 = arith.maximumf %10, %18 : vector<8x8x256xf32>
    %20 = vector.extract_strided_slice %19 {offsets = [0, 0, 0], sizes = [8, 8, 128], strides = [1, 1, 1]} : vector<8x8x256xf32> to vector<8x8x128xf32>
    %21 = vector.extract_strided_slice %19 {offsets = [0, 0, 128], sizes = [8, 8, 128], strides = [1, 1, 1]} : vector<8x8x256xf32> to vector<8x8x128xf32>
    %22 = arith.maximumf %20, %21 : vector<8x8x128xf32>
    %cst = arith.constant 0.000000e+00 : f32
    %23 = vector.broadcast %cst : f32 to vector<8x8x128xf32>
    %24 = arith.maximumf %22, %23 : vector<8x8x128xf32>
    %c0_7 = arith.constant 0 : index
    %c0_8 = arith.constant 0 : index
    %c0_9 = arith.constant 0 : index
    %25 = vector.load %arg4[%c0_7, %c0_8, %c0_9] : memref<8x8x128xf32, #tpu.memory_space<vmem>>, vector<8x8x128xf32>
    tpu.vector_store %arg4[%c0_7, %c0_8, %c0_9], %24 {strides = array<i32>} : memref<8x8x128xf32, #tpu.memory_space<vmem>>, vector<8x8x128xf32>,
    return
  }
  func.func @transform_0(%arg0: i32) -> (i32, i32, i32, i32) {
    %c0_i32 = arith.constant 0 : i32
    %c0_i32_0 = arith.constant 0 : i32
    %c0_i32_1 = arith.constant 0 : i32
    %c0_i32_2 = arith.constant 0 : i32
    return %arg0, %c0_i32, %c0_i32_0, %c0_i32_1 : i32, i32, i32, i32
  }
  func.func @transform_1(%arg0: i32) -> (i32, i32) {
    %c0_i32 = arith.constant 0 : i32
    %c0_i32_0 = arith.constant 0 : i32
    %c0_i32_1 = arith.constant 0 : i32
    return %c0_i32, %c0_i32_0 : i32, i32
  }
  func.func @transform_2(%arg0: i32) -> (i32, i32) {
    %c0_i32 = arith.constant 0 : i32
    %c0_i32_0 = arith.constant 0 : i32
    %c0_i32_1 = arith.constant 0 : i32
    return %c0_i32, %c0_i32_0 : i32, i32
  }
  func.func @transform_3(%arg0: i32) -> (i32, i32, i32) {
    %c0_i32 = arith.constant 0 : i32
    %c0_i32_0 = arith.constant 0 : i32
    %c0_i32_1 = arith.constant 0 : i32
    return %arg0, %c0_i32, %c0_i32_0 : i32, i32, i32
  }
}

</mosaic_0001>

<llo_original>
// kernel: tile.18
$region0: #{tile.18}
  #allocation0 [shape = 's32[1]{0}', space=sflag, size = 0x4, scoped, tag = 'scoped memory for tile.18']
  %s0 = inlined_call_operand.vmem [shape: f32[128], index: 0, kind: input, shape index: {}]
  %s1 = inlined_call_operand.vmem [shape: f32[2,128], index: 1, kind: output, shape index: {}]
  // Predicated region
  $region2: #{tile.18} parent=0 // pred_check
    _
  $region3: #{tile.18} parent=0 // pred_check_branch
    %3 = sbr.rel (0) target = $region5
  $region4: #{tile.18} parent=0 // pred_region
    _
  $region5: #{tile.18} parent=0 // pred_fallthru
    _
  %v4 = vld [vmem:[%s0] ss:$0 sm:$0xff]
  %5 = vst [vmem:[%s1] sm:$0x3] %v4

// kernel: conv2d_block_forward.3
$region0: #{conv2d_block_forward.3}
  #allocation0 [shape = 'u32[]', space=smem, size = 0x4, offset = 0x4, fixed_abs, tag = 'smem constant byte address 0x4 - core index']
  #allocation1 [shape = 'u32[72,128]{1,0:T(1,128)}', space=vmem, size = 0x9000, scoped, tag = 'internal scratch']
  %s0 = inlined_call_operand.vmem [shape: f32[16,2,8,256], index: 0, kind: input, shape index: {}]
  %s1 = inlined_call_operand.vmem [shape: f32[1,256], index: 1, kind: input, shape index: {}]
  %s2 = inlined_call_operand.vmem [shape: f32[1,256], index: 2, kind: input, shape index: {}]
  %s3 = inlined_call_operand.vmem [shape: f32[16,8,128], index: 3, kind: output, shape index: {}]
  %s4 = sld [smem:[#allocation0]]
  $region45: #{conv2d_block_forward.3} parent=0
    _
  %s6 = ssub.s32 1, %s4
  %s7 = scalar_select 0, %s6, %s4
  loop: start=0, step=1, limit=4
  $region2: #{conv2d_block_forward.3} parent=0 // loop_pre_header
    _
  $region3: #{conv2d_block_forward.3} parent=0 // loop_header
    %s9 = sphi 0, %s13
    %p10 = scmp.ge.s32.totalorder %s9, 4
    %s19 = sphi 0, %s21
    %s22 = sphi 0, %s19
    %s23 = sphi 0, %s22
    %s39 = sphi 0, %s23
    %s43 = sphi 0, %s43
    %s45 = sphi 0, %s43
    %s46 = sphi 0, %s45
    %s60 = sphi 0, %s46
    %s64 = sphi 0, %s64
    %s66 = sphi 0, %s64
    %s67 = sphi 0, %s66
    %s81 = sphi 0, %s67
    %s87 = sphi 0, %s89
    %s90 = sphi 0, %s87
    %s91 = sphi 0, %s90
    %s107 = sphi 0, %s91
  $region4: #{conv2d_block_forward.3} parent=0 // loop_header_branch
    %12 = sbr.rel (%p10) target = $region8
  $region5: #{conv2d_block_forward.3} parent=0 // loop_body
    %s14 = ssub.s32 %s9, 1
    %s15 = ssub.s32 %s9, 2
    %s16 = sadd.s32 %s9, 1
    %s17 = ssub.s32 %s9, %s16
    %p18 = scmp.eq.s32.totalorder %s17, 0
    %s20 = sadd.s32 %s19, 1
    %s21 = scalar_select %p18, %s19, %s20
    %p24 = pneg %p18
    %p25 = scmp.eq.s32.totalorder %s9, 1
    %p26 = por %p24, %p25
    %p27 = scmp.ne.s32.totalorder %s19, %s22
    %p28 = scmp.eq.s32.totalorder %s9, 0
    %p29 = por %p27, %p28
    %p30 = scmp.ne.s32.totalorder %s19, %s22
    %p31 = scmp.eq.s32.totalorder %s14, 1
    %p32 = por %p30, %p31
    %p33 = scmp.ne.s32.totalorder %s22, %s23
    %p34 = scmp.eq.s32.totalorder %s14, 0
    %p35 = por %p33, %p34
    %p36 = scmp.ne.s32.totalorder %s22, %s23
    %p37 = scmp.eq.s32.totalorder %s15, 1
    %p38 = por %p36, %p37
    %p40 = scmp.ne.s32.totalorder %s23, %s39
    %p41 = scmp.eq.s32.totalorder %s15, 0
    %p42 = por %p40, %p41
    %s44 = sadd.s32 %s43, 1
    %p47 = scmp.eq.s32.totalorder %s9, 1
    %p48 = scmp.ne.s32.totalorder %s43, %s45
    %p49 = scmp.eq.s32.totalorder %s9, 0
    %p50 = por %p48, %p49
    %p51 = scmp.ne.s32.totalorder %s43, %s45
    %p52 = scmp.eq.s32.totalorder %s14, 1
    %p53 = por %p51, %p52
    %p54 = scmp.ne.s32.totalorder %s45, %s46
    %p55 = scmp.eq.s32.totalorder %s14, 0
    %p56 = por %p54, %p55
    %p57 = scmp.ne.s32.totalorder %s45, %s46
    %p58 = scmp.eq.s32.totalorder %s15, 1
    %p59 = por %p57, %p58
    %p61 = scmp.ne.s32.totalorder %s46, %s60
    %p62 = scmp.eq.s32.totalorder %s15, 0
    %p63 = por %p61, %p62
    %s65 = sadd.s32 %s64, 1
    %p68 = scmp.eq.s32.totalorder %s9, 1
    %p69 = scmp.ne.s32.totalorder %s64, %s66
    %p70 = scmp.eq.s32.totalorder %s9, 0
    %p71 = por %p69, %p70
    %p72 = scmp.ne.s32.totalorder %s64, %s66
    %p73 = scmp.eq.s32.totalorder %s14, 1
    %p74 = por %p72, %p73
    %p75 = scmp.ne.s32.totalorder %s66, %s67
    %p76 = scmp.eq.s32.totalorder %s14, 0
    %p77 = por %p75, %p76
    %p78 = scmp.ne.s32.totalorder %s66, %s67
    %p79 = scmp.eq.s32.totalorder %s15, 1
    %p80 = por %p78, %p79
    %p82 = scmp.ne.s32.totalorder %s67, %s81
    %p83 = scmp.eq.s32.totalorder %s15, 0
    %p84 = por %p82, %p83
    %s85 = ssub.s32 %s9, %s16
    %p86 = scmp.eq.s32.totalorder %s85, 0
    %s88 = sadd.s32 %s87, 1
    %s89 = scalar_select %p86, %s87, %s88
    %p92 = pneg %p86
    %p93 = scmp.eq.s32.totalorder %s9, 1
    %p94 = por %p92, %p93
    %p95 = scmp.ne.s32.totalorder %s87, %s90
    %p96 = scmp.eq.s32.totalorder %s9, 0
    %p97 = por %p95, %p96
    %p98 = scmp.ne.s32.totalorder %s87, %s90
    %p99 = scmp.eq.s32.totalorder %s14, 1
    %p100 = por %p98, %p99
    %p101 = scmp.ne.s32.totalorder %s90, %s91
    %p102 = scmp.eq.s32.totalorder %s14, 0
    %p103 = por %p101, %p102
    %p104 = scmp.ne.s32.totalorder %s90, %s91
    %p105 = scmp.eq.s32.totalorder %s15, 1
    %p106 = por %p104, %p105
    %p108 = scmp.ne.s32.totalorder %s91, %s107
    %p109 = scmp.eq.s32.totalorder %s15, 0
    %p110 = por %p108, %p109
    %p111 = scmp.le.s32.totalorder 1, %s9
    %p112 = scmp.lt.s32.totalorder %s9, 3
    %p113 = pnand %p111, %p112
    %p114 = pneg %p113
    // Predicated region
    $region9: #{conv2d_block_forward.3} parent=5 // pred_check
      _
    $region10: #{conv2d_block_forward.3} parent=5 // pred_check_branch
      %116 = sbr.rel (%p113) target = $region12
    $region11: #{conv2d_block_forward.3} parent=5 // pred_region
      %s117 = ssub.s32 %s9, 1
      // Predicated region
      $region13: #{conv2d_block_forward.3} parent=11 // pred_check
        %p118 = pneg %p56
      $region14: #{conv2d_block_forward.3} parent=11 // pred_check_branch
        %120 = sbr.rel (%p118) target = $region16
      $region15: #{conv2d_block_forward.3} parent=11 // pred_region
        _
      $region16: #{conv2d_block_forward.3} parent=11 // pred_fallthru
        _
      // Predicated region
      $region17: #{conv2d_block_forward.3} parent=11 // pred_check
        %p121 = pneg %p77
      $region18: #{conv2d_block_forward.3} parent=11 // pred_check_branch
        %123 = sbr.rel (%p121) target = $region20
      $region19: #{conv2d_block_forward.3} parent=11 // pred_region
        _
      $region20: #{conv2d_block_forward.3} parent=11 // pred_fallthru
        _
    $region12: #{conv2d_block_forward.3} parent=5 // pred_fallthru
      _
    %p124 = scmp.lt.s32.totalorder %s9, 2
    // Predicated region
    $region21: #{conv2d_block_forward.3} parent=5 // pred_check
      %p125 = pneg %p124
    $region22: #{conv2d_block_forward.3} parent=5 // pred_check_branch
      %127 = sbr.rel (%p125) target = $region24
    $region23: #{conv2d_block_forward.3} parent=5 // pred_region
      // Predicated region
      $region25: #{conv2d_block_forward.3} parent=23 // pred_check
        %p128 = pneg %p29
      $region26: #{conv2d_block_forward.3} parent=23 // pred_check_branch
        %130 = sbr.rel (%p128) target = $region28
      $region27: #{conv2d_block_forward.3} parent=23 // pred_region
        %s131 = smul.u32 8, %s9
        %p132 = scmp.lt.s32.totalorder %s131, 15
        %s133 = scalar_select %p132, %s131, 15
        %s134 = smul.addr %s133, 4
        %s135 = smul.addr %s134, 8
        %s136 = scalar_lea.vmem %s0, %s135
        %s137 = smul.u32 8, %s9
      $region28: #{conv2d_block_forward.3} parent=23 // pred_fallthru
        _
    $region24: #{conv2d_block_forward.3} parent=5 // pred_fallthru
      _
    %p138 = scmp.le.s32.totalorder 1, %s9
    %p139 = scmp.lt.s32.totalorder %s9, 3
    %p140 = pnand %p138, %p139
    %p141 = pneg %p140
    // Predicated region
    $region29: #{conv2d_block_forward.3} parent=5 // pred_check
      _
    $region30: #{conv2d_block_forward.3} parent=5 // pred_check_branch
      %143 = sbr.rel (%p140) target = $region32
    $region31: #{conv2d_block_forward.3} parent=5 // pred_region
      %s144 = ssub.s32 %s9, 1
      %s145 = smul.u32 8, %s14
      %p146 = scmp.lt.s32.totalorder %s145, 15
      %s147 = scalar_select %p146, %s145, 15
      %s148 = smul.addr %s147, 4
      %s149 = smul.addr %s148, 8
      %s150 = scalar_lea.vmem %s0, %s149
      %p151 = pneg %p35
      %p152 = pneg %p32
      %p153 = pneg %p56
      %p154 = pneg %p53
      %p155 = pneg %p77
      %p156 = pneg %p74
      %p157 = pneg %p103
      %p158 = pneg %p100
      %s159 = smul.u32 8, %s14
      %p160 = scmp.lt.s32.totalorder %s159, 15
      %s161 = scalar_select %p160, %s159, 15
      %s162 = smul.addr %s161, 8
      %s163 = scalar_lea.vmem %s3, %s162
      %s164 = smul.u32 8, %s14
      %p165 = scmp.lt.s32.totalorder %s164, 15
      %s166 = scalar_select %p165, %s164, 15
      %s167 = smul.addr %s166, 4
      %s168 = smul.addr %s167, 8
      %s169 = scalar_lea.vmem %s0, %s168
      %s170 = smul.u32 8, %s14
      %s171 = smul.u32 8, %s14
      %p172 = scmp.lt.s32.totalorder %s171, 15
      %s173 = scalar_select %p172, %s171, 15
      %s174 = smul.addr %s173, 8
      %s175 = scalar_lea.vmem %s3, %s174
      %s176 = smul.u32 8, %s14
      %v177 = vld [vmem:[%s1] sm:$0x3]
      %v178 = vld [vmem:[%s2] sm:$0x3]
      %v179 = vld [vmem:[%s169] sm:$0xff]
      %v180 = vld [vmem:[%s169 + $0x8] sm:$0xff]
      %v181 = vld [vmem:[%s169 + $0x10] sm:$0xff]
      %v182 = vld [vmem:[%s169 + $0x18] sm:$0xff]
      %v183 = vld [vmem:[%s169 + $0x20] sm:$0xff]
      %v184 = vld [vmem:[%s169 + $0x28] sm:$0xff]
      %v185 = vld [vmem:[%s169 + $0x30] sm:$0xff]
      %v186 = vld [vmem:[%s169 + $0x38] sm:$0xff]
      %v187 = vld [vmem:[%s169 + $0x40] sm:$0xff]
      %v188 = vld [vmem:[%s169 + $0x48] sm:$0xff]
      %v189 = vld [vmem:[%s169 + $0x50] sm:$0xff]
      %v190 = vld [vmem:[%s169 + $0x58] sm:$0xff]
      %v191 = vld [vmem:[%s169 + $0x60] sm:$0xff]
      %v192 = vld [vmem:[%s169 + $0x68] sm:$0xff]
      %v193 = vld [vmem:[%s169 + $0x70] sm:$0xff]
      %v194 = vld [vmem:[%s169 + $0x78] sm:$0xff]
      %v195 = vld [vmem:[%s169 + $0x80] sm:$0xff]
      %v196 = vld [vmem:[%s169 + $0x88] sm:$0xff]
      %v197 = vld [vmem:[%s169 + $0x90] sm:$0xff]
      %v198 = vld [vmem:[%s169 + $0x98] sm:$0xff]
      %v199 = vld [vmem:[%s169 + $0xa0] sm:$0xff]
      %v200 = vld [vmem:[%s169 + $0xa8] sm:$0xff]
      %v201 = vld [vmem:[%s169 + $0xb0] sm:$0xff]
      %v202 = vld [vmem:[%s169 + $0xb8] sm:$0xff]
      %v203 = vld [vmem:[%s169 + $0xc0] sm:$0xff]
      %v204 = vld [vmem:[%s169 + $0xc8] sm:$0xff]
      %v205 = vld [vmem:[%s169 + $0xd0] sm:$0xff]
      %v206 = vld [vmem:[%s169 + $0xd8] sm:$0xff]
      %v207 = vld [vmem:[%s169 + $0xe0] sm:$0xff]
      %v208 = vld [vmem:[%s169 + $0xe8] sm:$0xff]
      %v209 = vld [vmem:[%s169 + $0xf0] sm:$0xff]
      %v210 = vld [vmem:[%s169 + $0xf8] sm:$0xff]
      %v212 = vperm.slane %v177, 0
      %v213 = vperm.slane %v177, 1
      %v216 = vmul.f32 %v179, %v212
      %v217 = vmul.f32 %v180, %v213
      %v218 = vmul.f32 %v183, %v212
      %v219 = vmul.f32 %v184, %v213
      %v220 = vmul.f32 %v187, %v212
      %v221 = vmul.f32 %v188, %v213
      %v222 = vmul.f32 %v191, %v212
      %v223 = vmul.f32 %v192, %v213
      %v224 = vmul.f32 %v195, %v212
      %v225 = vmul.f32 %v196, %v213
      %v226 = vmul.f32 %v199, %v212
      %v227 = vmul.f32 %v200, %v213
      %v228 = vmul.f32 %v203, %v212
      %v229 = vmul.f32 %v204, %v213
      %v230 = vmul.f32 %v207, %v212
      %v231 = vmul.f32 %v208, %v213
      %v233 = vperm.slane %v178, 0
      %v234 = vperm.slane %v178, 1
      %v237 = vadd.f32 %v216, %v233
      %v238 = vadd.f32 %v217, %v234
      %v239 = vadd.f32 %v218, %v233
      %v240 = vadd.f32 %v219, %v234
      %v241 = vadd.f32 %v220, %v233
      %v242 = vadd.f32 %v221, %v234
      %v243 = vadd.f32 %v222, %v233
      %v244 = vadd.f32 %v223, %v234
      %v245 = vadd.f32 %v224, %v233
      %v246 = vadd.f32 %v225, %v234
      %v247 = vadd.f32 %v226, %v233
      %v248 = vadd.f32 %v227, %v234
      %v249 = vadd.f32 %v228, %v233
      %v250 = vadd.f32 %v229, %v234
      %v251 = vadd.f32 %v230, %v233
      %v252 = vadd.f32 %v231, %v234
      %v253 = vmul.f32 %v181, %v212
      %v254 = vmul.f32 %v182, %v213
      %v255 = vmul.f32 %v185, %v212
      %v256 = vmul.f32 %v186, %v213
      %v257 = vmul.f32 %v189, %v212
      %v258 = vmul.f32 %v190, %v213
      %v259 = vmul.f32 %v193, %v212
      %v260 = vmul.f32 %v194, %v213
      %v261 = vmul.f32 %v197, %v212
      %v262 = vmul.f32 %v198, %v213
      %v263 = vmul.f32 %v201, %v212
      %v264 = vmul.f32 %v202, %v213
      %v265 = vmul.f32 %v205, %v212
      %v266 = vmul.f32 %v206, %v213
      %v267 = vmul.f32 %v209, %v212
      %v268 = vmul.f32 %v210, %v213
      %v269 = vadd.f32 %v253, %v233
      %v270 = vadd.f32 %v254, %v234
      %v271 = vadd.f32 %v255, %v233
      %v272 = vadd.f32 %v256, %v234
      %v273 = vadd.f32 %v257, %v233
      %v274 = vadd.f32 %v258, %v234
      %v275 = vadd.f32 %v259, %v233
      %v276 = vadd.f32 %v260, %v234
      %v277 = vadd.f32 %v261, %v233
      %v278 = vadd.f32 %v262, %v234
      %v279 = vadd.f32 %v263, %v233
      %v280 = vadd.f32 %v264, %v234
      %v281 = vadd.f32 %v265, %v233
      %v282 = vadd.f32 %v266, %v234
      %v283 = vadd.f32 %v267, %v233
      %v284 = vadd.f32 %v268, %v234
      %v285 = vmax.f32 %v237, %v269
      %v286 = vmax.f32 %v238, %v270
      %v287 = vmax.f32 %v239, %v271
      %v288 = vmax.f32 %v240, %v272
      %v289 = vmax.f32 %v241, %v273
      %v290 = vmax.f32 %v242, %v274
      %v291 = vmax.f32 %v243, %v275
      %v292 = vmax.f32 %v244, %v276
      %v293 = vmax.f32 %v245, %v277
      %v294 = vmax.f32 %v246, %v278
      %v295 = vmax.f32 %v247, %v279
      %v296 = vmax.f32 %v248, %v280
      %v297 = vmax.f32 %v249, %v281
      %v298 = vmax.f32 %v250, %v282
      %v299 = vmax.f32 %v251, %v283
      %v300 = vmax.f32 %v252, %v284
      %v301 = vmax.f32 %v285, %v286
      %v302 = vmax.f32 %v287, %v288
      %v303 = vmax.f32 %v289, %v290
      %v304 = vmax.f32 %v291, %v292
      %v305 = vmax.f32 %v293, %v294
      %v306 = vmax.f32 %v295, %v296
      %v307 = vmax.f32 %v297, %v298
      %v308 = vmax.f32 %v299, %v300
      %v309 = vmax.f32 %v301, 0.0
      %v310 = vmax.f32 %v302, 0.0
      %v311 = vmax.f32 %v303, 0.0
      %v312 = vmax.f32 %v304, 0.0
      %v313 = vmax.f32 %v305, 0.0
      %v314 = vmax.f32 %v306, 0.0
      %v315 = vmax.f32 %v307, 0.0
      %v316 = vmax.f32 %v308, 0.0
      %317 = vst [vmem:[%s175] sm:$0xff] %v309
      %318 = vst [vmem:[%s175 + $0x8] sm:$0xff] %v310
      %319 = vst [vmem:[%s175 + $0x10] sm:$0xff] %v311
      %320 = vst [vmem:[%s175 + $0x18] sm:$0xff] %v312
      %321 = vst [vmem:[%s175 + $0x20] sm:$0xff] %v313
      %322 = vst [vmem:[%s175 + $0x28] sm:$0xff] %v314
      %323 = vst [vmem:[%s175 + $0x30] sm:$0xff] %v315
      %324 = vst [vmem:[%s175 + $0x38] sm:$0xff] %v316
      %s325 = smul.u32 8, %s14
      %p326 = scmp.lt.s32.totalorder %s325, 15
      %s327 = scalar_select %p326, %s325, 15
      %s328 = smul.addr %s327, 8
      %s329 = scalar_lea.vmem %s3, %s328
      // Predicated region
      $region33: #{conv2d_block_forward.3} parent=31 // pred_check
        %p330 = pneg %p100
      $region34: #{conv2d_block_forward.3} parent=31 // pred_check_branch
        %332 = sbr.rel (%p330) target = $region36
      $region35: #{conv2d_block_forward.3} parent=31 // pred_region
        %s333 = smul.u32 8, %s14
      $region36: #{conv2d_block_forward.3} parent=31 // pred_fallthru
        _
    $region32: #{conv2d_block_forward.3} parent=5 // pred_fallthru
      _
    %p334 = scmp.le.s32.totalorder 2, %s9
    // Predicated region
    $region37: #{conv2d_block_forward.3} parent=5 // pred_check
      %p335 = pneg %p334
    $region38: #{conv2d_block_forward.3} parent=5 // pred_check_branch
      %337 = sbr.rel (%p335) target = $region40
    $region39: #{conv2d_block_forward.3} parent=5 // pred_region
      %s338 = ssub.s32 %s9, 2
      // Predicated region
      $region41: #{conv2d_block_forward.3} parent=39 // pred_check
        %p339 = pneg %p106
      $region42: #{conv2d_block_forward.3} parent=39 // pred_check_branch
        %341 = sbr.rel (%p339) target = $region44
      $region43: #{conv2d_block_forward.3} parent=39 // pred_region
        %s342 = smul.u32 8, %s15
        %p343 = scmp.lt.s32.totalorder %s342, 15
        %s344 = scalar_select %p343, %s342, 15
        %s345 = smul.addr %s344, 8
        %s346 = scalar_lea.vmem %s3, %s345
      $region44: #{conv2d_block_forward.3} parent=39 // pred_fallthru
        _
    $region40: #{conv2d_block_forward.3} parent=5 // pred_fallthru
      _
  $region6: #{conv2d_block_forward.3} parent=0 // loop_footer
    %s13 = sadd.s32 1, %s9
  $region7: #{conv2d_block_forward.3} parent=0 // loop_footer_branch
    %8 = sbr.rel target = $region3
  $region8: #{conv2d_block_forward.3} parent=0 // loop_exit
    _

// kernel: conv2d_block_forward.2
$region0: #{conv2d_block_forward.2}
  #allocation0 [shape = 'u32[]', space=smem, size = 0x4, offset = 0x4, fixed_abs, tag = 'smem constant byte address 0x4 - core index']
  #allocation1 [shape = 'u32[72,128]{1,0:T(1,128)}', space=vmem, size = 0x9000, scoped, tag = 'internal scratch']
  %s0 = inlined_call_operand.vmem [shape: f32[2,18,18,4], index: 0, kind: input, shape index: {}]
  %s1 = inlined_call_operand.vmem [shape: f32[9,4,128], index: 1, kind: input, shape index: {}]
  %s2 = inlined_call_operand.vmem [shape: f32[2,256,128], index: 2, kind: output, shape index: {0}]
  %s3 = inlined_call_operand.vmem [shape: f32[2,1,256], index: 3, kind: output, shape index: {1}]
  %4 = xla_tuple %s2, %s3
  %s5 = sld [smem:[#allocation0]]
  $region49: #{conv2d_block_forward.2} parent=0
    _
  %s7 = ssub.s32 1, %s5
  %s8 = scalar_select 0, %s7, %s5
  loop: start=0, step=1, limit=4
  $region2: #{conv2d_block_forward.2} parent=0 // loop_pre_header
    _
  $region3: #{conv2d_block_forward.2} parent=0 // loop_header
    %s10 = sphi 0, %s14
    %p11 = scmp.ge.s32.totalorder %s10, 4
    %s20 = sphi 0, %s22
    %s23 = sphi 0, %s20
    %s24 = sphi 0, %s23
    %s40 = sphi 0, %s24
    %s44 = sphi 0, %s44
    %s46 = sphi 0, %s44
    %s47 = sphi 0, %s46
    %s61 = sphi 0, %s47
    %s67 = sphi 0, %s69
    %s70 = sphi 0, %s67
    %s71 = sphi 0, %s70
    %s87 = sphi 0, %s71
    %s93 = sphi 0, %s95
    %s96 = sphi 0, %s93
    %s97 = sphi 0, %s96
    %s113 = sphi 0, %s97
  $region4: #{conv2d_block_forward.2} parent=0 // loop_header_branch
    %13 = sbr.rel (%p11) target = $region8
  $region5: #{conv2d_block_forward.2} parent=0 // loop_body
    %s15 = ssub.s32 %s10, 1
    %s16 = ssub.s32 %s10, 2
    %s17 = sadd.s32 %s10, 1
    %s18 = ssub.s32 %s10, %s17
    %p19 = scmp.eq.s32.totalorder %s18, 0
    %s21 = sadd.s32 %s20, 1
    %s22 = scalar_select %p19, %s20, %s21
    %p25 = pneg %p19
    %p26 = scmp.eq.s32.totalorder %s10, 1
    %p27 = por %p25, %p26
    %p28 = scmp.ne.s32.totalorder %s20, %s23
    %p29 = scmp.eq.s32.totalorder %s10, 0
    %p30 = por %p28, %p29
    %p31 = scmp.ne.s32.totalorder %s20, %s23
    %p32 = scmp.eq.s32.totalorder %s15, 1
    %p33 = por %p31, %p32
    %p34 = scmp.ne.s32.totalorder %s23, %s24
    %p35 = scmp.eq.s32.totalorder %s15, 0
    %p36 = por %p34, %p35
    %p37 = scmp.ne.s32.totalorder %s23, %s24
    %p38 = scmp.eq.s32.totalorder %s16, 1
    %p39 = por %p37, %p38
    %p41 = scmp.ne.s32.totalorder %s24, %s40
    %p42 = scmp.eq.s32.totalorder %s16, 0
    %p43 = por %p41, %p42
    %s45 = sadd.s32 %s44, 1
    %p48 = scmp.eq.s32.totalorder %s10, 1
    %p49 = scmp.ne.s32.totalorder %s44, %s46
    %p50 = scmp.eq.s32.totalorder %s10, 0
    %p51 = por %p49, %p50
    %p52 = scmp.ne.s32.totalorder %s44, %s46
    %p53 = scmp.eq.s32.totalorder %s15, 1
    %p54 = por %p52, %p53
    %p55 = scmp.ne.s32.totalorder %s46, %s47
    %p56 = scmp.eq.s32.totalorder %s15, 0
    %p57 = por %p55, %p56
    %p58 = scmp.ne.s32.totalorder %s46, %s47
    %p59 = scmp.eq.s32.totalorder %s16, 1
    %p60 = por %p58, %p59
    %p62 = scmp.ne.s32.totalorder %s47, %s61
    %p63 = scmp.eq.s32.totalorder %s16, 0
    %p64 = por %p62, %p63
    %s65 = ssub.s32 %s10, %s17
    %p66 = scmp.eq.s32.totalorder %s65, 0
    %s68 = sadd.s32 %s67, 1
    %s69 = scalar_select %p66, %s67, %s68
    %p72 = pneg %p66
    %p73 = scmp.eq.s32.totalorder %s10, 1
    %p74 = por %p72, %p73
    %p75 = scmp.ne.s32.totalorder %s67, %s70
    %p76 = scmp.eq.s32.totalorder %s10, 0
    %p77 = por %p75, %p76
    %p78 = scmp.ne.s32.totalorder %s67, %s70
    %p79 = scmp.eq.s32.totalorder %s15, 1
    %p80 = por %p78, %p79
    %p81 = scmp.ne.s32.totalorder %s70, %s71
    %p82 = scmp.eq.s32.totalorder %s15, 0
    %p83 = por %p81, %p82
    %p84 = scmp.ne.s32.totalorder %s70, %s71
    %p85 = scmp.eq.s32.totalorder %s16, 1
    %p86 = por %p84, %p85
    %p88 = scmp.ne.s32.totalorder %s71, %s87
    %p89 = scmp.eq.s32.totalorder %s16, 0
    %p90 = por %p88, %p89
    %s91 = ssub.s32 %s10, %s17
    %p92 = scmp.eq.s32.totalorder %s91, 0
    %s94 = sadd.s32 %s93, 1
    %s95 = scalar_select %p92, %s93, %s94
    %p98 = pneg %p92
    %p99 = scmp.eq.s32.totalorder %s10, 1
    %p100 = por %p98, %p99
    %p101 = scmp.ne.s32.totalorder %s93, %s96
    %p102 = scmp.eq.s32.totalorder %s10, 0
    %p103 = por %p101, %p102
    %p104 = scmp.ne.s32.totalorder %s93, %s96
    %p105 = scmp.eq.s32.totalorder %s15, 1
    %p106 = por %p104, %p105
    %p107 = scmp.ne.s32.totalorder %s96, %s97
    %p108 = scmp.eq.s32.totalorder %s15, 0
    %p109 = por %p107, %p108
    %p110 = scmp.ne.s32.totalorder %s96, %s97
    %p111 = scmp.eq.s32.totalorder %s16, 1
    %p112 = por %p110, %p111
    %p114 = scmp.ne.s32.totalorder %s97, %s113
    %p115 = scmp.eq.s32.totalorder %s16, 0
    %p116 = por %p114, %p115
    %p117 = scmp.le.s32.totalorder 1, %s10
    %p118 = scmp.lt.s32.totalorder %s10, 3
    %p119 = pnand %p117, %p118
    %p120 = pneg %p119
    // Predicated region
    $region9: #{conv2d_block_forward.2} parent=5 // pred_check
      _
    $region10: #{conv2d_block_forward.2} parent=5 // pred_check_branch
      %122 = sbr.rel (%p119) target = $region12
    $region11: #{conv2d_block_forward.2} parent=5 // pred_region
      %s123 = ssub.s32 %s10, 1
      // Predicated region
      $region13: #{conv2d_block_forward.2} parent=11 // pred_check
        %p124 = pneg %p57
      $region14: #{conv2d_block_forward.2} parent=11 // pred_check_branch
        %126 = sbr.rel (%p124) target = $region16
      $region15: #{conv2d_block_forward.2} parent=11 // pred_region
        _
      $region16: #{conv2d_block_forward.2} parent=11 // pred_fallthru
        _
    $region12: #{conv2d_block_forward.2} parent=5 // pred_fallthru
      _
    %p127 = scmp.lt.s32.totalorder %s10, 2
    // Predicated region
    $region17: #{conv2d_block_forward.2} parent=5 // pred_check
      %p128 = pneg %p127
    $region18: #{conv2d_block_forward.2} parent=5 // pred_check_branch
      %130 = sbr.rel (%p128) target = $region20
    $region19: #{conv2d_block_forward.2} parent=5 // pred_region
      // Predicated region
      $region21: #{conv2d_block_forward.2} parent=19 // pred_check
        %p131 = pneg %p30
      $region22: #{conv2d_block_forward.2} parent=19 // pred_check_branch
        %133 = sbr.rel (%p131) target = $region24
      $region23: #{conv2d_block_forward.2} parent=19 // pred_region
        %p134 = scmp.lt.s32.totalorder %s10, 1
        %s135 = scalar_select %p134, %s10, 1
        %s136 = smul.addr %s135, 54
        %s137 = smul.addr %s136, 8
        %s138 = scalar_lea.vmem %s0, %s137
      $region24: #{conv2d_block_forward.2} parent=19 // pred_fallthru
        _
    $region20: #{conv2d_block_forward.2} parent=5 // pred_fallthru
      _
    %p139 = scmp.le.s32.totalorder 1, %s10
    %p140 = scmp.lt.s32.totalorder %s10, 3
    %p141 = pnand %p139, %p140
    %p142 = pneg %p141
    // Predicated region
    $region25: #{conv2d_block_forward.2} parent=5 // pred_check
      _
    $region26: #{conv2d_block_forward.2} parent=5 // pred_check_branch
      %144 = sbr.rel (%p141) target = $region28
    $region27: #{conv2d_block_forward.2} parent=5 // pred_region
      %s145 = ssub.s32 %s10, 1
      %p146 = scmp.lt.s32.totalorder %s15, 1
      %s147 = scalar_select %p146, %s15, 1
      %s148 = smul.addr %s147, 54
      %s149 = smul.addr %s148, 8
      %s150 = scalar_lea.vmem %s0, %s149
      %p151 = pneg %p36
      %p152 = pneg %p33
      %p153 = pneg %p57
      %p154 = pneg %p54
      %p155 = pneg %p83
      %p156 = pneg %p80
      %p157 = scmp.lt.s32.totalorder %s15, 1
      %s158 = scalar_select %p157, %s15, 1
      %s159 = smul.addr %s158, 32
      %s160 = smul.addr %s159, 8
      %s161 = scalar_lea.vmem %s2, %s160
      %p162 = pneg %p109
      %p163 = pneg %p106
      %p164 = scmp.lt.s32.totalorder %s15, 1
      %s165 = scalar_select %p164, %s15, 1
      %s166 = smul.addr %s165, 2
      %s167 = scalar_lea.vmem %s3, %s166
      %p168 = scmp.lt.s32.totalorder %s15, 1
      %s169 = scalar_select %p168, %s15, 1
      %s170 = smul.addr %s169, 54
      %s171 = smul.addr %s170, 8
      %s172 = scalar_lea.vmem %s0, %s171
      %p173 = scmp.lt.s32.totalorder %s15, 1
      %s174 = scalar_select %p173, %s15, 1
      %s175 = smul.addr %s174, 32
      %s176 = smul.addr %s175, 8
      %s177 = scalar_lea.vmem %s2, %s176
      %p178 = scmp.lt.s32.totalorder %s15, 1
      %s179 = scalar_select %p178, %s15, 1
      %s180 = smul.addr %s179, 2
      %s181 = scalar_lea.vmem %s3, %s180
      %v182 = vld [vmem:[%s172] sm:$0xff]
      %v183 = vld [vmem:[%s172 + $0x8] sm:$0xff]
      %v184 = vld [vmem:[%s172 + $0x10] sm:$0x3]
      %v185 = vld [vmem:[%s172 + $0x18] sm:$0xff]
      %v186 = vld [vmem:[%s172 + $0x20] sm:$0xff]
      %v187 = vld [vmem:[%s172 + $0x28] sm:$0x3]
      %v188 = vld [vmem:[%s172 + $0x30] sm:$0xff]
      %v189 = vld [vmem:[%s172 + $0x38] sm:$0xff]
      %v190 = vld [vmem:[%s172 + $0x40] sm:$0x3]
      %v191 = vld [vmem:[%s172 + $0x48] sm:$0xff]
      %v192 = vld [vmem:[%s172 + $0x50] sm:$0xff]
      %v193 = vld [vmem:[%s172 + $0x58] sm:$0x3]
      %v194 = vld [vmem:[%s172 + $0x60] sm:$0xff]
      %v195 = vld [vmem:[%s172 + $0x68] sm:$0xff]
      %v196 = vld [vmem:[%s172 + $0x70] sm:$0x3]
      %v197 = vld [vmem:[%s172 + $0x78] sm:$0xff]
      %v198 = vld [vmem:[%s172 + $0x80] sm:$0xff]
      %v199 = vld [vmem:[%s172 + $0x88] sm:$0x3]
      %v200 = vld [vmem:[%s172 + $0x90] sm:$0xff]
      %v201 = vld [vmem:[%s172 + $0x98] sm:$0xff]
      %v202 = vld [vmem:[%s172 + $0xa0] sm:$0x3]
      %v203 = vld [vmem:[%s172 + $0xa8] sm:$0xff]
      %v204 = vld [vmem:[%s172 + $0xb0] sm:$0xff]
      %v205 = vld [vmem:[%s172 + $0xb8] sm:$0x3]
      %v206 = vld [vmem:[%s172 + $0xc0] sm:$0xff]
      %v207 = vld [vmem:[%s172 + $0xc8] sm:$0xff]
      %v208 = vld [vmem:[%s172 + $0xd0] sm:$0x3]
      %v209 = vld [vmem:[%s172 + $0xd8] sm:$0xff]
      %v210 = vld [vmem:[%s172 + $0xe0] sm:$0xff]
      %v211 = vld [vmem:[%s172 + $0xe8] sm:$0x3]
      %v212 = vld [vmem:[%s172 + $0xf0] sm:$0xff]
      %v213 = vld [vmem:[%s172 + $0xf8] sm:$0xff]
      %v214 = vld [vmem:[%s172 + $0x100] sm:$0x3]
      %v215 = vld [vmem:[%s172 + $0x108] sm:$0xff]
      %v216 = vld [vmem:[%s172 + $0x110] sm:$0xff]
      %v217 = vld [vmem:[%s172 + $0x118] sm:$0x3]
      %v218 = vld [vmem:[%s172 + $0x120] sm:$0xff]
      %v219 = vld [vmem:[%s172 + $0x128] sm:$0xff]
      %v220 = vld [vmem:[%s172 + $0x130] sm:$0x3]
      %v221 = vld [vmem:[%s172 + $0x138] sm:$0xff]
      %v222 = vld [vmem:[%s172 + $0x140] sm:$0xff]
      %v223 = vld [vmem:[%s172 + $0x148] sm:$0x3]
      %v224 = vld [vmem:[%s172 + $0x150] sm:$0xff]
      %v225 = vld [vmem:[%s172 + $0x158] sm:$0xff]
      %v226 = vld [vmem:[%s172 + $0x160] sm:$0x3]
      %v227 = vld [vmem:[%s172 + $0x168] sm:$0xff]
      %v228 = vld [vmem:[%s172 + $0x170] sm:$0xff]
      %v229 = vld [vmem:[%s172 + $0x178] sm:$0x3]
      %v230 = vld [vmem:[%s172 + $0x180] sm:$0xff]
      %v231 = vld [vmem:[%s172 + $0x188] sm:$0xff]
      %v232 = vld [vmem:[%s172 + $0x190] sm:$0x3]
      %v233 = vld [vmem:[%s172 + $0x198] sm:$0xff]
      %v234 = vld [vmem:[%s172 + $0x1a0] sm:$0xff]
      %v235 = vld [vmem:[%s172 + $0x1a8] sm:$0x3]
      %v236 = vld [vmem:[%s1] sm:$0xf]
      %vm285 = vcmask 1046528
      %v286 = vrot.slane %v182, 1
      %v287 = vrot.slane %v183, 1
      %v288 = vsel %vm285, %v286, %v287
      %v289 = vrot.slane %v184, 1
      %v290 = vsel %vm285, %v287, %v289
      %v291 = vrot.slane %v185, 1
      %v292 = vrot.slane %v186, 1
      %v293 = vsel %vm285, %v291, %v292
      %v294 = vrot.slane %v187, 1
      %v295 = vsel %vm285, %v292, %v294
      %v296 = vrot.slane %v188, 1
      %v297 = vrot.slane %v189, 1
      %v298 = vsel %vm285, %v296, %v297
      %v299 = vrot.slane %v190, 1
      %v300 = vsel %vm285, %v297, %v299
      %v301 = vrot.slane %v191, 1
      %v302 = vrot.slane %v192, 1
      %v303 = vsel %vm285, %v301, %v302
      %v304 = vrot.slane %v193, 1
      %v305 = vsel %vm285, %v302, %v304
      %v306 = vrot.slane %v194, 1
      %v307 = vrot.slane %v195, 1
      %v308 = vsel %vm285, %v306, %v307
      %v309 = vrot.slane %v196, 1
      %v310 = vsel %vm285, %v307, %v309
      %v311 = vrot.slane %v197, 1
      %v312 = vrot.slane %v198, 1
      %v313 = vsel %vm285, %v311, %v312
      %v314 = vrot.slane %v199, 1
      %v315 = vsel %vm285, %v312, %v314
      %v316 = vrot.slane %v200, 1
      %v317 = vrot.slane %v201, 1
      %v318 = vsel %vm285, %v316, %v317
      %v319 = vrot.slane %v202, 1
      %v320 = vsel %vm285, %v317, %v319
      %v321 = vrot.slane %v203, 1
      %v322 = vrot.slane %v204, 1
      %v323 = vsel %vm285, %v321, %v322
      %v324 = vrot.slane %v205, 1
      %v325 = vsel %vm285, %v322, %v324
      %v326 = vrot.slane %v206, 1
      %v327 = vrot.slane %v207, 1
      %v328 = vsel %vm285, %v326, %v327
      %v329 = vrot.slane %v208, 1
      %v330 = vsel %vm285, %v327, %v329
      %v331 = vrot.slane %v209, 1
      %v332 = vrot.slane %v210, 1
      %v333 = vsel %vm285, %v331, %v332
      %v334 = vrot.slane %v211, 1
      %v335 = vsel %vm285, %v332, %v334
      %v336 = vrot.slane %v212, 1
      %v337 = vrot.slane %v213, 1
      %v338 = vsel %vm285, %v336, %v337
      %v339 = vrot.slane %v214, 1
      %v340 = vsel %vm285, %v337, %v339
      %v341 = vrot.slane %v215, 1
      %v342 = vrot.slane %v216, 1
      %v343 = vsel %vm285, %v341, %v342
      %v344 = vrot.slane %v217, 1
      %v345 = vsel %vm285, %v342, %v344
      %v346 = vrot.slane %v218, 1
      %v347 = vrot.slane %v219, 1
      %v348 = vsel %vm285, %v346, %v347
      %v349 = vrot.slane %v220, 1
      %v350 = vsel %vm285, %v347, %v349
      %v351 = vrot.slane %v221, 1
      %v352 = vrot.slane %v222, 1
      %v353 = vsel %vm285, %v351, %v352
      %v354 = vrot.slane %v223, 1
      %v355 = vsel %vm285, %v352, %v354
      %v356 = vrot.slane %v224, 1
      %v357 = vrot.slane %v225, 1
      %v358 = vsel %vm285, %v356, %v357
      %v359 = vrot.slane %v226, 1
      %v360 = vsel %vm285, %v357, %v359
      %v361 = vrot.slane %v227, 1
      %v362 = vrot.slane %v228, 1
      %v363 = vsel %vm285, %v361, %v362
      %v364 = vrot.slane %v229, 1
      %v365 = vsel %vm285, %v362, %v364
      %s366 = scalar_lea.vmem %s1, 4
      %v367 = vld [vmem:[%s366] sm:$0xf]
      %vm368 = vcmask 31744
      %v369 = vsel %vm368, %v288, 0
      %v371 = vsel %vm368, %v290, 0
      %v373 = vsel %vm368, %v293, 0
      %v375 = vsel %vm368, %v295, 0
      %v377 = vsel %vm368, %v298, 0
      %v379 = vsel %vm368, %v300, 0
      %v381 = vsel %vm368, %v303, 0
      %v383 = vsel %vm368, %v305, 0
      %v385 = vsel %vm368, %v308, 0
      %v387 = vsel %vm368, %v310, 0
      %v389 = vsel %vm368, %v313, 0
      %v391 = vsel %vm368, %v315, 0
      %v393 = vsel %vm368, %v318, 0
      %v395 = vsel %vm368, %v320, 0
      %v397 = vsel %vm368, %v323, 0
      %v399 = vsel %vm368, %v325, 0
      %v401 = vsel %vm368, %v328, 0
      %v403 = vsel %vm368, %v330, 0
      %v405 = vsel %vm368, %v333, 0
      %v407 = vsel %vm368, %v335, 0
      %v409 = vsel %vm368, %v338, 0
      %v411 = vsel %vm368, %v340, 0
      %v413 = vsel %vm368, %v343, 0
      %v415 = vsel %vm368, %v345, 0
      %v417 = vsel %vm368, %v348, 0
      %v419 = vsel %vm368, %v350, 0
      %v421 = vsel %vm368, %v353, 0
      %v423 = vsel %vm368, %v355, 0
      %v425 = vsel %vm368, %v358, 0
      %v427 = vsel %vm368, %v360, 0
      %v429 = vsel %vm368, %v363, 0
      %v431 = vsel %vm368, %v365, 0
      %vm433 = vcmask 1043456
      %v435 = vsel %vm433, %v367, 0
      %437 = vmatpush.msra.mxu0 0.0
      %438 = vmatpush.msra.mxu0 0.0
      %439 = vmatpush.msra.mxu0 0.0
      %440 = vmatpush.msra.mxu0 0.0
      %441 = vmatpush.msra.mxu0 0.0
      %442 = vmatpush.msra.mxu0 0.0
      %443 = vmatpush.msra.mxu0 0.0
      %444 = vmatpush.msra.mxu0 0.0
      %445 = vmatpush.msra.mxu0 0.0
      %446 = vmatpush.msra.mxu0 0.0
      %447 = vmatpush.msra.mxu0 0.0
      %448 = vmatpush.msra.mxu0 0.0
      %449 = vmatpush.msra.mxu0 0.0
      %450 = vmatpush.msra.mxu0 0.0
      %451 = vmatpush.msra.mxu0 0.0
      %452 = vmatpush.msra.mxu0 %v435
      %453 = vmatmul.f32.gmra.mxu0 %v369
      %v454 = vpop.f32.mrf.mxu0
      %v455 = vadd.f32 0.0, %v454
      %456 = vmatmul.f32.gmra.mxu0 %v371
      %v457 = vpop.f32.mrf.mxu0
      %v458 = vadd.f32 0.0, %v457
      %459 = vmatmul.f32.gmra.mxu0 %v373
      %v460 = vpop.f32.mrf.mxu0
      %v461 = vadd.f32 0.0, %v460
      %462 = vmatmul.f32.gmra.mxu0 %v375
      %v463 = vpop.f32.mrf.mxu0
      %v464 = vadd.f32 0.0, %v463
      %465 = vmatmul.f32.gmra.mxu0 %v377
      %v466 = vpop.f32.mrf.mxu0
      %v467 = vadd.f32 0.0, %v466
      %468 = vmatmul.f32.gmra.mxu0 %v379
      %v469 = vpop.f32.mrf.mxu0
      %v470 = vadd.f32 0.0, %v469
      %471 = vmatmul.f32.gmra.mxu0 %v381
      %v472 = vpop.f32.mrf.mxu0
      %v473 = vadd.f32 0.0, %v472
      %474 = vmatmul.f32.gmra.mxu0 %v383
      %v475 = vpop.f32.mrf.mxu0
      %v476 = vadd.f32 0.0, %v475
      %477 = vmatmul.f32.gmra.mxu0 %v385
      %v478 = vpop.f32.mrf.mxu0
      %v479 = vadd.f32 0.0, %v478
      %480 = vmatmul.f32.gmra.mxu0 %v387
      %v481 = vpop.f32.mrf.mxu0
      %v482 = vadd.f32 0.0, %v481
      %483 = vmatmul.f32.gmra.mxu0 %v389
      %v484 = vpop.f32.mrf.mxu0
      %v485 = vadd.f32 0.0, %v484
      %486 = vmatmul.f32.gmra.mxu0 %v391
      %v487 = vpop.f32.mrf.mxu0
      %v488 = vadd.f32 0.0, %v487
      %489 = vmatmul.f32.gmra.mxu0 %v393
      %v490 = vpop.f32.mrf.mxu0
      %v491 = vadd.f32 0.0, %v490
      %492 = vmatmul.f32.gmra.mxu0 %v395
      %v493 = vpop.f32.mrf.mxu0
      %v494 = vadd.f32 0.0, %v493
      %495 = vmatmul.f32.gmra.mxu0 %v397
      %v496 = vpop.f32.mrf.mxu0
      %v497 = vadd.f32 0.0, %v496
      %498 = vmatmul.f32.gmra.mxu0 %v399
      %v499 = vpop.f32.mrf.mxu0
      %v500 = vadd.f32 0.0, %v499
      %501 = vmatmul.f32.gmra.mxu0 %v401
      %v502 = vpop.f32.mrf.mxu0
      %v503 = vadd.f32 0.0, %v502
      %504 = vmatmul.f32.gmra.mxu0 %v403
      %v505 = vpop.f32.mrf.mxu0
      %v506 = vadd.f32 0.0, %v505
      %507 = vmatmul.f32.gmra.mxu0 %v405
      %v508 = vpop.f32.mrf.mxu0
      %v509 = vadd.f32 0.0, %v508
      %510 = vmatmul.f32.gmra.mxu0 %v407
      %v511 = vpop.f32.mrf.mxu0
      %v512 = vadd.f32 0.0, %v511
      %513 = vmatmul.f32.gmra.mxu0 %v409
      %v514 = vpop.f32.mrf.mxu0
      %v515 = vadd.f32 0.0, %v514
      %516 = vmatmul.f32.gmra.mxu0 %v411
      %v517 = vpop.f32.mrf.mxu0
      %v518 = vadd.f32 0.0, %v517
      %519 = vmatmul.f32.gmra.mxu0 %v413
      %v520 = vpop.f32.mrf.mxu0
      %v521 = vadd.f32 0.0, %v520
      %522 = vmatmul.f32.gmra.mxu0 %v415
      %v523 = vpop.f32.mrf.mxu0
      %v524 = vadd.f32 0.0, %v523
      %525 = vmatmul.f32.gmra.mxu0 %v417
      %v526 = vpop.f32.mrf.mxu0
      %v527 = vadd.f32 0.0, %v526
      %528 = vmatmul.f32.gmra.mxu0 %v419
      %v529 = vpop.f32.mrf.mxu0
      %v530 = vadd.f32 0.0, %v529
      %531 = vmatmul.f32.gmra.mxu0 %v421
      %v532 = vpop.f32.mrf.mxu0
      %v533 = vadd.f32 0.0, %v532
      %534 = vmatmul.f32.gmra.mxu0 %v423
      %v535 = vpop.f32.mrf.mxu0
      %v536 = vadd.f32 0.0, %v535
      %537 = vmatmul.f32.gmra.mxu0 %v425
      %v538 = vpop.f32.mrf.mxu0
      %v539 = vadd.f32 0.0, %v538
      %540 = vmatmul.f32.gmra.mxu0 %v427
      %v541 = vpop.f32.mrf.mxu0
      %v542 = vadd.f32 0.0, %v541
      %543 = vmatmul.f32.gmra.mxu0 %v429
      %v544 = vpop.f32.mrf.mxu0
      %v545 = vadd.f32 0.0, %v544
      %546 = vmatmul.f32.gmra.mxu0 %v431
      %v547 = vpop.f32.mrf.mxu0
      %v548 = vadd.f32 0.0, %v547
      %549 = vdwg.mxu0
      %v550 = vsel %vm368, %v182, 0
      %v552 = vsel %vm368, %v183, 0
      %v554 = vsel %vm368, %v185, 0
      %v556 = vsel %vm368, %v186, 0
      %v558 = vsel %vm368, %v188, 0
      %v560 = vsel %vm368, %v189, 0
      %v562 = vsel %vm368, %v191, 0
      %v564 = vsel %vm368, %v192, 0
      %v566 = vsel %vm368, %v194, 0
      %v568 = vsel %vm368, %v195, 0
      %v570 = vsel %vm368, %v197, 0
      %v572 = vsel %vm368, %v198, 0
      %v574 = vsel %vm368, %v200, 0
      %v576 = vsel %vm368, %v201, 0
      %v578 = vsel %vm368, %v203, 0
      %v580 = vsel %vm368, %v204, 0
      %v582 = vsel %vm368, %v206, 0
      %v584 = vsel %vm368, %v207, 0
      %v586 = vsel %vm368, %v209, 0
      %v588 = vsel %vm368, %v210, 0
      %v590 = vsel %vm368, %v212, 0
      %v592 = vsel %vm368, %v213, 0
      %v594 = vsel %vm368, %v215, 0
      %v596 = vsel %vm368, %v216, 0
      %v598 = vsel %vm368, %v218, 0
      %v600 = vsel %vm368, %v219, 0
      %v602 = vsel %vm368, %v221, 0
      %v604 = vsel %vm368, %v222, 0
      %v606 = vsel %vm368, %v224, 0
      %v608 = vsel %vm368, %v225, 0
      %v610 = vsel %vm368, %v227, 0
      %v612 = vsel %vm368, %v228, 0
      %v615 = vsel %vm433, %v236, 0
      %617 = vmatpush.msra.mxu0 0.0
      %618 = vmatpush.msra.mxu0 0.0
      %619 = vmatpush.msra.mxu0 0.0
      %620 = vmatpush.msra.mxu0 0.0
      %621 = vmatpush.msra.mxu0 0.0
      %622 = vmatpush.msra.mxu0 0.0
      %623 = vmatpush.msra.mxu0 0.0
      %624 = vmatpush.msra.mxu0 0.0
      %625 = vmatpush.msra.mxu0 0.0
      %626 = vmatpush.msra.mxu0 0.0
      %627 = vmatpush.msra.mxu0 0.0
      %628 = vmatpush.msra.mxu0 0.0
      %629 = vmatpush.msra.mxu0 0.0
      %630 = vmatpush.msra.mxu0 0.0
      %631 = vmatpush.msra.mxu0 0.0
      %632 = vmatpush.msra.mxu0 %v615
      %633 = vmatmul.f32.gmra.mxu0 %v550
      %v634 = vpop.f32.mrf.mxu0
      %v635 = vadd.f32 %v455, %v634
      %636 = vmatmul.f32.gmra.mxu0 %v552
      %v637 = vpop.f32.mrf.mxu0
      %v638 = vadd.f32 %v458, %v637
      %639 = vmatmul.f32.gmra.mxu0 %v554
      %v640 = vpop.f32.mrf.mxu0
      %v641 = vadd.f32 %v461, %v640
      %642 = vmatmul.f32.gmra.mxu0 %v556
      %v643 = vpop.f32.mrf.mxu0
      %v644 = vadd.f32 %v464, %v643
      %645 = vmatmul.f32.gmra.mxu0 %v558
      %v646 = vpop.f32.mrf.mxu0
      %v647 = vadd.f32 %v467, %v646
      %648 = vmatmul.f32.gmra.mxu0 %v560
      %v649 = vpop.f32.mrf.mxu0
      %v650 = vadd.f32 %v470, %v649
      %651 = vmatmul.f32.gmra.mxu0 %v562
      %v652 = vpop.f32.mrf.mxu0
      %v653 = vadd.f32 %v473, %v652
      %654 = vmatmul.f32.gmra.mxu0 %v564
      %v655 = vpop.f32.mrf.mxu0
      %v656 = vadd.f32 %v476, %v655
      %657 = vmatmul.f32.gmra.mxu0 %v566
      %v658 = vpop.f32.mrf.mxu0
      %v659 = vadd.f32 %v479, %v658
      %660 = vmatmul.f32.gmra.mxu0 %v568
      %v661 = vpop.f32.mrf.mxu0
      %v662 = vadd.f32 %v482, %v661
      %663 = vmatmul.f32.gmra.mxu0 %v570
      %v664 = vpop.f32.mrf.mxu0
      %v665 = vadd.f32 %v485, %v664
      %666 = vmatmul.f32.gmra.mxu0 %v572
      %v667 = vpop.f32.mrf.mxu0
      %v668 = vadd.f32 %v488, %v667
      %669 = vmatmul.f32.gmra.mxu0 %v574
      %v670 = vpop.f32.mrf.mxu0
      %v671 = vadd.f32 %v491, %v670
      %672 = vmatmul.f32.gmra.mxu0 %v576
      %v673 = vpop.f32.mrf.mxu0
      %v674 = vadd.f32 %v494, %v673
      %675 = vmatmul.f32.gmra.mxu0 %v578
      %v676 = vpop.f32.mrf.mxu0
      %v677 = vadd.f32 %v497, %v676
      %678 = vmatmul.f32.gmra.mxu0 %v580
      %v679 = vpop.f32.mrf.mxu0
      %v680 = vadd.f32 %v500, %v679
      %681 = vmatmul.f32.gmra.mxu0 %v582
      %v682 = vpop.f32.mrf.mxu0
      %v683 = vadd.f32 %v503, %v682
      %684 = vmatmul.f32.gmra.mxu0 %v584
      %v685 = vpop.f32.mrf.mxu0
      %v686 = vadd.f32 %v506, %v685
      %687 = vmatmul.f32.gmra.mxu0 %v586
      %v688 = vpop.f32.mrf.mxu0
      %v689 = vadd.f32 %v509, %v688
      %690 = vmatmul.f32.gmra.mxu0 %v588
      %v691 = vpop.f32.mrf.mxu0
      %v692 = vadd.f32 %v512, %v691
      %693 = vmatmul.f32.gmra.mxu0 %v590
      %v694 = vpop.f32.mrf.mxu0
      %v695 = vadd.f32 %v515, %v694
      %696 = vmatmul.f32.gmra.mxu0 %v592
      %v697 = vpop.f32.mrf.mxu0
      %v698 = vadd.f32 %v518, %v697
      %699 = vmatmul.f32.gmra.mxu0 %v594
      %v700 = vpop.f32.mrf.mxu0
      %v701 = vadd.f32 %v521, %v700
      %702 = vmatmul.f32.gmra.mxu0 %v596
      %v703 = vpop.f32.mrf.mxu0
      %v704 = vadd.f32 %v524, %v703
      %705 = vmatmul.f32.gmra.mxu0 %v598
      %v706 = vpop.f32.mrf.mxu0
      %v707 = vadd.f32 %v527, %v706
      %708 = vmatmul.f32.gmra.mxu0 %v600
      %v709 = vpop.f32.mrf.mxu0
      %v710 = vadd.f32 %v530, %v709
      %711 = vmatmul.f32.gmra.mxu0 %v602
      %v712 = vpop.f32.mrf.mxu0
      %v713 = vadd.f32 %v533, %v712
      %714 = vmatmul.f32.gmra.mxu0 %v604
      %v715 = vpop.f32.mrf.mxu0
      %v716 = vadd.f32 %v536, %v715
      %717 = vmatmul.f32.gmra.mxu0 %v606
      %v718 = vpop.f32.mrf.mxu0
      %v719 = vadd.f32 %v539, %v718
      %720 = vmatmul.f32.gmra.mxu0 %v608
      %v721 = vpop.f32.mrf.mxu0
      %v722 = vadd.f32 %v542, %v721
      %723 = vmatmul.f32.gmra.mxu0 %v610
      %v724 = vpop.f32.mrf.mxu0
      %v725 = vadd.f32 %v545, %v724
      %726 = vmatmul.f32.gmra.mxu0 %v612
      %v727 = vpop.f32.mrf.mxu0
      %v728 = vadd.f32 %v548, %v727
      %729 = vdwg.mxu0
      %vm730 = vcmask 1045504
      %v731 = vrot.slane %v182, 2
      %v732 = vrot.slane %v183, 2
      %v733 = vsel %vm730, %v731, %v732
      %v734 = vrot.slane %v184, 2
      %v735 = vsel %vm730, %v732, %v734
      %v736 = vrot.slane %v185, 2
      %v737 = vrot.slane %v186, 2
      %v738 = vsel %vm730, %v736, %v737
      %v739 = vrot.slane %v187, 2
      %v740 = vsel %vm730, %v737, %v739
      %v741 = vrot.slane %v188, 2
      %v742 = vrot.slane %v189, 2
      %v743 = vsel %vm730, %v741, %v742
      %v744 = vrot.slane %v190, 2
      %v745 = vsel %vm730, %v742, %v744
      %v746 = vrot.slane %v191, 2
      %v747 = vrot.slane %v192, 2
      %v748 = vsel %vm730, %v746, %v747
      %v749 = vrot.slane %v193, 2
      %v750 = vsel %vm730, %v747, %v749
      %v751 = vrot.slane %v194, 2
      %v752 = vrot.slane %v195, 2
      %v753 = vsel %vm730, %v751, %v752
      %v754 = vrot.slane %v196, 2
      %v755 = vsel %vm730, %v752, %v754
      %v756 = vrot.slane %v197, 2
      %v757 = vrot.slane %v198, 2
      %v758 = vsel %vm730, %v756, %v757
      %v759 = vrot.slane %v199, 2
      %v760 = vsel %vm730, %v757, %v759
      %v761 = vrot.slane %v200, 2
      %v762 = vrot.slane %v201, 2
      %v763 = vsel %vm730, %v761, %v762
      %v764 = vrot.slane %v202, 2
      %v765 = vsel %vm730, %v762, %v764
      %v766 = vrot.slane %v203, 2
      %v767 = vrot.slane %v204, 2
      %v768 = vsel %vm730, %v766, %v767
      %v769 = vrot.slane %v205, 2
      %v770 = vsel %vm730, %v767, %v769
      %v771 = vrot.slane %v206, 2
      %v772 = vrot.slane %v207, 2
      %v773 = vsel %vm730, %v771, %v772
      %v774 = vrot.slane %v208, 2
      %v775 = vsel %vm730, %v772, %v774
      %v776 = vrot.slane %v209, 2
      %v777 = vrot.slane %v210, 2
      %v778 = vsel %vm730, %v776, %v777
      %v779 = vrot.slane %v211, 2
      %v780 = vsel %vm730, %v777, %v779
      %v781 = vrot.slane %v212, 2
      %v782 = vrot.slane %v213, 2
      %v783 = vsel %vm730, %v781, %v782
      %v784 = vrot.slane %v214, 2
      %v785 = vsel %vm730, %v782, %v784
      %v786 = vrot.slane %v215, 2
      %v787 = vrot.slane %v216, 2
      %v788 = vsel %vm730, %v786, %v787
      %v789 = vrot.slane %v217, 2
      %v790 = vsel %vm730, %v787, %v789
      %v791 = vrot.slane %v218, 2
      %v792 = vrot.slane %v219, 2
      %v793 = vsel %vm730, %v791, %v792
      %v794 = vrot.slane %v220, 2
      %v795 = vsel %vm730, %v792, %v794
      %v796 = vrot.slane %v221, 2
      %v797 = vrot.slane %v222, 2
      %v798 = vsel %vm730, %v796, %v797
      %v799 = vrot.slane %v223, 2
      %v800 = vsel %vm730, %v797, %v799
      %v801 = vrot.slane %v224, 2
      %v802 = vrot.slane %v225, 2
      %v803 = vsel %vm730, %v801, %v802
      %v804 = vrot.slane %v226, 2
      %v805 = vsel %vm730, %v802, %v804
      %v806 = vrot.slane %v227, 2
      %v807 = vrot.slane %v228, 2
      %v808 = vsel %vm730, %v806, %v807
      %v809 = vrot.slane %v229, 2
      %v810 = vsel %vm730, %v807, %v809
      %s811 = scalar_lea.vmem %s1, 8
      %v812 = vld [vmem:[%s811] sm:$0xf]
      %v813 = vsel %vm368, %v733, 0
      %v815 = vsel %vm368, %v735, 0
      %v817 = vsel %vm368, %v738, 0
      %v819 = vsel %vm368, %v740, 0
      %v821 = vsel %vm368, %v743, 0
      %v823 = vsel %vm368, %v745, 0
      %v825 = vsel %vm368, %v748, 0
      %v827 = vsel %vm368, %v750, 0
      %v829 = vsel %vm368, %v753, 0
      %v831 = vsel %vm368, %v755, 0
      %v833 = vsel %vm368, %v758, 0
      %v835 = vsel %vm368, %v760, 0
      %v837 = vsel %vm368, %v763, 0
      %v839 = vsel %vm368, %v765, 0
      %v841 = vsel %vm368, %v768, 0
      %v843 = vsel %vm368, %v770, 0
      %v845 = vsel %vm368, %v773, 0
      %v847 = vsel %vm368, %v775, 0
      %v849 = vsel %vm368, %v778, 0
      %v851 = vsel %vm368, %v780, 0
      %v853 = vsel %vm368, %v783, 0
      %v855 = vsel %vm368, %v785, 0
      %v857 = vsel %vm368, %v788, 0
      %v859 = vsel %vm368, %v790, 0
      %v861 = vsel %vm368, %v793, 0
      %v863 = vsel %vm368, %v795, 0
      %v865 = vsel %vm368, %v798, 0
      %v867 = vsel %vm368, %v800, 0
      %v869 = vsel %vm368, %v803, 0
      %v871 = vsel %vm368, %v805, 0
      %v873 = vsel %vm368, %v808, 0
      %v875 = vsel %vm368, %v810, 0
      %v878 = vsel %vm433, %v812, 0
      %880 = vmatpush.msra.mxu0 0.0
      %881 = vmatpush.msra.mxu0 0.0
      %882 = vmatpush.msra.mxu0 0.0
      %883 = vmatpush.msra.mxu0 0.0
      %884 = vmatpush.msra.mxu0 0.0
      %885 = vmatpush.msra.mxu0 0.0
      %886 = vmatpush.msra.mxu0 0.0
      %887 = vmatpush.msra.mxu0 0.0
      %888 = vmatpush.msra.mxu0 0.0
      %889 = vmatpush.msra.mxu0 0.0
      %890 = vmatpush.msra.mxu0 0.0
      %891 = vmatpush.msra.mxu0 0.0
      %892 = vmatpush.msra.mxu0 0.0
      %893 = vmatpush.msra.mxu0 0.0
      %894 = vmatpush.msra.mxu0 0.0
      %895 = vmatpush.msra.mxu0 %v878
      %896 = vmatmul.f32.gmra.mxu0 %v813
      %v897 = vpop.f32.mrf.mxu0
      %v898 = vadd.f32 0.0, %v897
      %899 = vmatmul.f32.gmra.mxu0 %v815
      %v900 = vpop.f32.mrf.mxu0
      %v901 = vadd.f32 0.0, %v900
      %902 = vmatmul.f32.gmra.mxu0 %v817
      %v903 = vpop.f32.mrf.mxu0
      %v904 = vadd.f32 0.0, %v903
      %905 = vmatmul.f32.gmra.mxu0 %v819
      %v906 = vpop.f32.mrf.mxu0
      %v907 = vadd.f32 0.0, %v906
      %908 = vmatmul.f32.gmra.mxu0 %v821
      %v909 = vpop.f32.mrf.mxu0
      %v910 = vadd.f32 0.0, %v909
      %911 = vmatmul.f32.gmra.mxu0 %v823
      %v912 = vpop.f32.mrf.mxu0
      %v913 = vadd.f32 0.0, %v912
      %914 = vmatmul.f32.gmra.mxu0 %v825
      %v915 = vpop.f32.mrf.mxu0
      %v916 = vadd.f32 0.0, %v915
      %917 = vmatmul.f32.gmra.mxu0 %v827
      %v918 = vpop.f32.mrf.mxu0
      %v919 = vadd.f32 0.0, %v918
      %920 = vmatmul.f32.gmra.mxu0 %v829
      %v921 = vpop.f32.mrf.mxu0
      %v922 = vadd.f32 0.0, %v921
      %923 = vmatmul.f32.gmra.mxu0 %v831
      %v924 = vpop.f32.mrf.mxu0
      %v925 = vadd.f32 0.0, %v924
      %926 = vmatmul.f32.gmra.mxu0 %v833
      %v927 = vpop.f32.mrf.mxu0
      %v928 = vadd.f32 0.0, %v927
      %929 = vmatmul.f32.gmra.mxu0 %v835
      %v930 = vpop.f32.mrf.mxu0
      %v931 = vadd.f32 0.0, %v930
      %932 = vmatmul.f32.gmra.mxu0 %v837
      %v933 = vpop.f32.mrf.mxu0
      %v934 = vadd.f32 0.0, %v933
      %935 = vmatmul.f32.gmra.mxu0 %v839
      %v936 = vpop.f32.mrf.mxu0
      %v937 = vadd.f32 0.0, %v936
      %938 = vmatmul.f32.gmra.mxu0 %v841
      %v939 = vpop.f32.mrf.mxu0
      %v940 = vadd.f32 0.0, %v939
      %941 = vmatmul.f32.gmra.mxu0 %v843
      %v942 = vpop.f32.mrf.mxu0
      %v943 = vadd.f32 0.0, %v942
      %944 = vmatmul.f32.gmra.mxu0 %v845
      %v945 = vpop.f32.mrf.mxu0
      %v946 = vadd.f32 0.0, %v945
      %947 = vmatmul.f32.gmra.mxu0 %v847
      %v948 = vpop.f32.mrf.mxu0
      %v949 = vadd.f32 0.0, %v948
      %950 = vmatmul.f32.gmra.mxu0 %v849
      %v951 = vpop.f32.mrf.mxu0
      %v952 = vadd.f32 0.0, %v951
      %953 = vmatmul.f32.gmra.mxu0 %v851
      %v954 = vpop.f32.mrf.mxu0
      %v955 = vadd.f32 0.0, %v954
      %956 = vmatmul.f32.gmra.mxu0 %v853
      %v957 = vpop.f32.mrf.mxu0
      %v958 = vadd.f32 0.0, %v957
      %959 = vmatmul.f32.gmra.mxu0 %v855
      %v960 = vpop.f32.mrf.mxu0
      %v961 = vadd.f32 0.0, %v960
      %962 = vmatmul.f32.gmra.mxu0 %v857
      %v963 = vpop.f32.mrf.mxu0
      %v964 = vadd.f32 0.0, %v963
      %965 = vmatmul.f32.gmra.mxu0 %v859
      %v966 = vpop.f32.mrf.mxu0
      %v967 = vadd.f32 0.0, %v966
      %968 = vmatmul.f32.gmra.mxu0 %v861
      %v969 = vpop.f32.mrf.mxu0
      %v970 = vadd.f32 0.0, %v969
      %971 = vmatmul.f32.gmra.mxu0 %v863
      %v972 = vpop.f32.mrf.mxu0
      %v973 = vadd.f32 0.0, %v972
      %974 = vmatmul.f32.gmra.mxu0 %v865
      %v975 = vpop.f32.mrf.mxu0
      %v976 = vadd.f32 0.0, %v975
      %977 = vmatmul.f32.gmra.mxu0 %v867
      %v978 = vpop.f32.mrf.mxu0
      %v979 = vadd.f32 0.0, %v978
      %980 = vmatmul.f32.gmra.mxu0 %v869
      %v981 = vpop.f32.mrf.mxu0
      %v982 = vadd.f32 0.0, %v981
      %983 = vmatmul.f32.gmra.mxu0 %v871
      %v984 = vpop.f32.mrf.mxu0
      %v985 = vadd.f32 0.0, %v984
      %986 = vmatmul.f32.gmra.mxu0 %v873
      %v987 = vpop.f32.mrf.mxu0
      %v988 = vadd.f32 0.0, %v987
      %989 = vmatmul.f32.gmra.mxu0 %v875
      %v990 = vpop.f32.mrf.mxu0
      %v991 = vadd.f32 0.0, %v990
      %992 = vdwg.mxu0
      %v993 = vadd.f32 %v635, %v898
      %v994 = vadd.f32 %v638, %v901
      %v995 = vadd.f32 %v641, %v904
      %v996 = vadd.f32 %v644, %v907
      %v997 = vadd.f32 %v647, %v910
      %v998 = vadd.f32 %v650, %v913
      %v999 = vadd.f32 %v653, %v916
      %v1000 = vadd.f32 %v656, %v919
      %v1001 = vadd.f32 %v659, %v922
      %v1002 = vadd.f32 %v662, %v925
      %v1003 = vadd.f32 %v665, %v928
      %v1004 = vadd.f32 %v668, %v931
      %v1005 = vadd.f32 %v671, %v934
      %v1006 = vadd.f32 %v674, %v937
      %v1007 = vadd.f32 %v677, %v940
      %v1008 = vadd.f32 %v680, %v943
      %v1009 = vadd.f32 %v683, %v946
      %v1010 = vadd.f32 %v686, %v949
      %v1011 = vadd.f32 %v689, %v952
      %v1012 = vadd.f32 %v692, %v955
      %v1013 = vadd.f32 %v695, %v958
      %v1014 = vadd.f32 %v698, %v961
      %v1015 = vadd.f32 %v701, %v964
      %v1016 = vadd.f32 %v704, %v967
      %v1017 = vadd.f32 %v707, %v970
      %v1018 = vadd.f32 %v710, %v973
      %v1019 = vadd.f32 %v713, %v976
      %v1020 = vadd.f32 %v716, %v979
      %v1021 = vadd.f32 %v719, %v982
      %v1022 = vadd.f32 %v722, %v985
      %v1023 = vadd.f32 %v725, %v988
      %v1024 = vadd.f32 %v728, %v991
      %s1025 = scalar_lea.vmem %s1, 12
      %v1026 = vld [vmem:[%s1025] sm:$0xf]
      %v1028 = vsel %vm368, %v230, 0
      %v1031 = vsel %vm368, %v231, 0
      %v1034 = vsel %vm433, %v1026, 0
      %1036 = vmatpush.msra.mxu0 0.0
      %1037 = vmatpush.msra.mxu0 0.0
      %1038 = vmatpush.msra.mxu0 0.0
      %1039 = vmatpush.msra.mxu0 0.0
      %1040 = vmatpush.msra.mxu0 0.0
      %1041 = vmatpush.msra.mxu0 0.0
      %1042 = vmatpush.msra.mxu0 0.0
      %1043 = vmatpush.msra.mxu0 0.0
      %1044 = vmatpush.msra.mxu0 0.0
      %1045 = vmatpush.msra.mxu0 0.0
      %1046 = vmatpush.msra.mxu0 0.0
      %1047 = vmatpush.msra.mxu0 0.0
      %1048 = vmatpush.msra.mxu0 0.0
      %1049 = vmatpush.msra.mxu0 0.0
      %1050 = vmatpush.msra.mxu0 0.0
      %1051 = vmatpush.msra.mxu0 %v1034
      %1052 = vmatmul.f32.gmra.mxu0 %v554
      %v1053 = vpop.f32.mrf.mxu0
      %v1054 = vadd.f32 0.0, %v1053
      %1055 = vmatmul.f32.gmra.mxu0 %v556
      %v1056 = vpop.f32.mrf.mxu0
      %v1057 = vadd.f32 0.0, %v1056
      %1058 = vmatmul.f32.gmra.mxu0 %v558
      %v1059 = vpop.f32.mrf.mxu0
      %v1060 = vadd.f32 0.0, %v1059
      %1061 = vmatmul.f32.gmra.mxu0 %v560
      %v1062 = vpop.f32.mrf.mxu0
      %v1063 = vadd.f32 0.0, %v1062
      %1064 = vmatmul.f32.gmra.mxu0 %v562
      %v1065 = vpop.f32.mrf.mxu0
      %v1066 = vadd.f32 0.0, %v1065
      %1067 = vmatmul.f32.gmra.mxu0 %v564
      %v1068 = vpop.f32.mrf.mxu0
      %v1069 = vadd.f32 0.0, %v1068
      %1070 = vmatmul.f32.gmra.mxu0 %v566
      %v1071 = vpop.f32.mrf.mxu0
      %v1072 = vadd.f32 0.0, %v1071
      %1073 = vmatmul.f32.gmra.mxu0 %v568
      %v1074 = vpop.f32.mrf.mxu0
      %v1075 = vadd.f32 0.0, %v1074
      %1076 = vmatmul.f32.gmra.mxu0 %v570
      %v1077 = vpop.f32.mrf.mxu0
      %v1078 = vadd.f32 0.0, %v1077
      %1079 = vmatmul.f32.gmra.mxu0 %v572
      %v1080 = vpop.f32.mrf.mxu0
      %v1081 = vadd.f32 0.0, %v1080
      %1082 = vmatmul.f32.gmra.mxu0 %v574
      %v1083 = vpop.f32.mrf.mxu0
      %v1084 = vadd.f32 0.0, %v1083
      %1085 = vmatmul.f32.gmra.mxu0 %v576
      %v1086 = vpop.f32.mrf.mxu0
      %v1087 = vadd.f32 0.0, %v1086
      %1088 = vmatmul.f32.gmra.mxu0 %v578
      %v1089 = vpop.f32.mrf.mxu0
      %v1090 = vadd.f32 0.0, %v1089
      %1091 = vmatmul.f32.gmra.mxu0 %v580
      %v1092 = vpop.f32.mrf.mxu0
      %v1093 = vadd.f32 0.0, %v1092
      %1094 = vmatmul.f32.gmra.mxu0 %v582
      %v1095 = vpop.f32.mrf.mxu0
      %v1096 = vadd.f32 0.0, %v1095
      %1097 = vmatmul.f32.gmra.mxu0 %v584
      %v1098 = vpop.f32.mrf.mxu0
      %v1099 = vadd.f32 0.0, %v1098
      %1100 = vmatmul.f32.gmra.mxu0 %v586
      %v1101 = vpop.f32.mrf.mxu0
      %v1102 = vadd.f32 0.0, %v1101
      %1103 = vmatmul.f32.gmra.mxu0 %v588
      %v1104 = vpop.f32.mrf.mxu0
      %v1105 = vadd.f32 0.0, %v1104
      %1106 = vmatmul.f32.gmra.mxu0 %v590
      %v1107 = vpop.f32.mrf.mxu0
      %v1108 = vadd.f32 0.0, %v1107
      %1109 = vmatmul.f32.gmra.mxu0 %v592
      %v1110 = vpop.f32.mrf.mxu0
      %v1111 = vadd.f32 0.0, %v1110
      %1112 = vmatmul.f32.gmra.mxu0 %v594
      %v1113 = vpop.f32.mrf.mxu0
      %v1114 = vadd.f32 0.0, %v1113
      %1115 = vmatmul.f32.gmra.mxu0 %v596
      %v1116 = vpop.f32.mrf.mxu0
      %v1117 = vadd.f32 0.0, %v1116
      %1118 = vmatmul.f32.gmra.mxu0 %v598
      %v1119 = vpop.f32.mrf.mxu0
      %v1120 = vadd.f32 0.0, %v1119
      %1121 = vmatmul.f32.gmra.mxu0 %v600
      %v1122 = vpop.f32.mrf.mxu0
      %v1123 = vadd.f32 0.0, %v1122
      %1124 = vmatmul.f32.gmra.mxu0 %v602
      %v1125 = vpop.f32.mrf.mxu0
      %v1126 = vadd.f32 0.0, %v1125
      %1127 = vmatmul.f32.gmra.mxu0 %v604
      %v1128 = vpop.f32.mrf.mxu0
      %v1129 = vadd.f32 0.0, %v1128
      %1130 = vmatmul.f32.gmra.mxu0 %v606
      %v1131 = vpop.f32.mrf.mxu0
      %v1132 = vadd.f32 0.0, %v1131
      %1133 = vmatmul.f32.gmra.mxu0 %v608
      %v1134 = vpop.f32.mrf.mxu0
      %v1135 = vadd.f32 0.0, %v1134
      %1136 = vmatmul.f32.gmra.mxu0 %v610
      %v1137 = vpop.f32.mrf.mxu0
      %v1138 = vadd.f32 0.0, %v1137
      %1139 = vmatmul.f32.gmra.mxu0 %v612
      %v1140 = vpop.f32.mrf.mxu0
      %v1141 = vadd.f32 0.0, %v1140
      %1142 = vmatmul.f32.gmra.mxu0 %v1028
      %v1143 = vpop.f32.mrf.mxu0
      %v1144 = vadd.f32 0.0, %v1143
      %1145 = vmatmul.f32.gmra.mxu0 %v1031
      %v1146 = vpop.f32.mrf.mxu0
      %v1147 = vadd.f32 0.0, %v1146
      %1148 = vdwg.mxu0
      %v1149 = vadd.f32 %v993, %v1054
      %v1150 = vadd.f32 %v994, %v1057
      %v1151 = vadd.f32 %v995, %v1060
      %v1152 = vadd.f32 %v996, %v1063
      %v1153 = vadd.f32 %v997, %v1066
      %v1154 = vadd.f32 %v998, %v1069
      %v1155 = vadd.f32 %v999, %v1072
      %v1156 = vadd.f32 %v1000, %v1075
      %v1157 = vadd.f32 %v1001, %v1078
      %v1158 = vadd.f32 %v1002, %v1081
      %v1159 = vadd.f32 %v1003, %v1084
      %v1160 = vadd.f32 %v1004, %v1087
      %v1161 = vadd.f32 %v1005, %v1090
      %v1162 = vadd.f32 %v1006, %v1093
      %v1163 = vadd.f32 %v1007, %v1096
      %v1164 = vadd.f32 %v1008, %v1099
      %v1165 = vadd.f32 %v1009, %v1102
      %v1166 = vadd.f32 %v1010, %v1105
      %v1167 = vadd.f32 %v1011, %v1108
      %v1168 = vadd.f32 %v1012, %v1111
      %v1169 = vadd.f32 %v1013, %v1114
      %v1170 = vadd.f32 %v1014, %v1117
      %v1171 = vadd.f32 %v1015, %v1120
      %v1172 = vadd.f32 %v1016, %v1123
      %v1173 = vadd.f32 %v1017, %v1126
      %v1174 = vadd.f32 %v1018, %v1129
      %v1175 = vadd.f32 %v1019, %v1132
      %v1176 = vadd.f32 %v1020, %v1135
      %v1177 = vadd.f32 %v1021, %v1138
      %v1178 = vadd.f32 %v1022, %v1141
      %v1179 = vadd.f32 %v1023, %v1144
      %v1180 = vadd.f32 %v1024, %v1147
      %v1182 = vrot.slane %v230, 1
      %v1183 = vrot.slane %v231, 1
      %v1184 = vsel %vm285, %v1182, %v1183
      %v1185 = vrot.slane %v232, 1
      %v1186 = vsel %vm285, %v1183, %v1185
      %s1187 = scalar_lea.vmem %s1, 16
      %v1188 = vld [vmem:[%s1187] sm:$0xf]
      %v1189 = vsel %vm368, %v1184, 0
      %v1191 = vsel %vm368, %v1186, 0
      %v1194 = vsel %vm433, %v1188, 0
      %1196 = vmatpush.msra.mxu0 0.0
      %1197 = vmatpush.msra.mxu0 0.0
      %1198 = vmatpush.msra.mxu0 0.0
      %1199 = vmatpush.msra.mxu0 0.0
      %1200 = vmatpush.msra.mxu0 0.0
      %1201 = vmatpush.msra.mxu0 0.0
      %1202 = vmatpush.msra.mxu0 0.0
      %1203 = vmatpush.msra.mxu0 0.0
      %1204 = vmatpush.msra.mxu0 0.0
      %1205 = vmatpush.msra.mxu0 0.0
      %1206 = vmatpush.msra.mxu0 0.0
      %1207 = vmatpush.msra.mxu0 0.0
      %1208 = vmatpush.msra.mxu0 0.0
      %1209 = vmatpush.msra.mxu0 0.0
      %1210 = vmatpush.msra.mxu0 0.0
      %1211 = vmatpush.msra.mxu0 %v1194
      %1212 = vmatmul.f32.gmra.mxu0 %v373
      %v1213 = vpop.f32.mrf.mxu0
      %v1214 = vadd.f32 0.0, %v1213
      %1215 = vmatmul.f32.gmra.mxu0 %v375
      %v1216 = vpop.f32.mrf.mxu0
      %v1217 = vadd.f32 0.0, %v1216
      %1218 = vmatmul.f32.gmra.mxu0 %v377
      %v1219 = vpop.f32.mrf.mxu0
      %v1220 = vadd.f32 0.0, %v1219
      %1221 = vmatmul.f32.gmra.mxu0 %v379
      %v1222 = vpop.f32.mrf.mxu0
      %v1223 = vadd.f32 0.0, %v1222
      %1224 = vmatmul.f32.gmra.mxu0 %v381
      %v1225 = vpop.f32.mrf.mxu0
      %v1226 = vadd.f32 0.0, %v1225
      %1227 = vmatmul.f32.gmra.mxu0 %v383
      %v1228 = vpop.f32.mrf.mxu0
      %v1229 = vadd.f32 0.0, %v1228
      %1230 = vmatmul.f32.gmra.mxu0 %v385
      %v1231 = vpop.f32.mrf.mxu0
      %v1232 = vadd.f32 0.0, %v1231
      %1233 = vmatmul.f32.gmra.mxu0 %v387
      %v1234 = vpop.f32.mrf.mxu0
      %v1235 = vadd.f32 0.0, %v1234
      %1236 = vmatmul.f32.gmra.mxu0 %v389
      %v1237 = vpop.f32.mrf.mxu0
      %v1238 = vadd.f32 0.0, %v1237
      %1239 = vmatmul.f32.gmra.mxu0 %v391
      %v1240 = vpop.f32.mrf.mxu0
      %v1241 = vadd.f32 0.0, %v1240
      %1242 = vmatmul.f32.gmra.mxu0 %v393
      %v1243 = vpop.f32.mrf.mxu0
      %v1244 = vadd.f32 0.0, %v1243
      %1245 = vmatmul.f32.gmra.mxu0 %v395
      %v1246 = vpop.f32.mrf.mxu0
      %v1247 = vadd.f32 0.0, %v1246
      %1248 = vmatmul.f32.gmra.mxu0 %v397
      %v1249 = vpop.f32.mrf.mxu0
      %v1250 = vadd.f32 0.0, %v1249
      %1251 = vmatmul.f32.gmra.mxu0 %v399
      %v1252 = vpop.f32.mrf.mxu0
      %v1253 = vadd.f32 0.0, %v1252
      %1254 = vmatmul.f32.gmra.mxu0 %v401
      %v1255 = vpop.f32.mrf.mxu0
      %v1256 = vadd.f32 0.0, %v1255
      %1257 = vmatmul.f32.gmra.mxu0 %v403
      %v1258 = vpop.f32.mrf.mxu0
      %v1259 = vadd.f32 0.0, %v1258
      %1260 = vmatmul.f32.gmra.mxu0 %v405
      %v1261 = vpop.f32.mrf.mxu0
      %v1262 = vadd.f32 0.0, %v1261
      %1263 = vmatmul.f32.gmra.mxu0 %v407
      %v1264 = vpop.f32.mrf.mxu0
      %v1265 = vadd.f32 0.0, %v1264
      %1266 = vmatmul.f32.gmra.mxu0 %v409
      %v1267 = vpop.f32.mrf.mxu0
      %v1268 = vadd.f32 0.0, %v1267
      %1269 = vmatmul.f32.gmra.mxu0 %v411
      %v1270 = vpop.f32.mrf.mxu0
      %v1271 = vadd.f32 0.0, %v1270
      %1272 = vmatmul.f32.gmra.mxu0 %v413
      %v1273 = vpop.f32.mrf.mxu0
      %v1274 = vadd.f32 0.0, %v1273
      %1275 = vmatmul.f32.gmra.mxu0 %v415
      %v1276 = vpop.f32.mrf.mxu0
      %v1277 = vadd.f32 0.0, %v1276
      %1278 = vmatmul.f32.gmra.mxu0 %v417
      %v1279 = vpop.f32.mrf.mxu0
      %v1280 = vadd.f32 0.0, %v1279
      %1281 = vmatmul.f32.gmra.mxu0 %v419
      %v1282 = vpop.f32.mrf.mxu0
      %v1283 = vadd.f32 0.0, %v1282
      %1284 = vmatmul.f32.gmra.mxu0 %v421
      %v1285 = vpop.f32.mrf.mxu0
      %v1286 = vadd.f32 0.0, %v1285
      %1287 = vmatmul.f32.gmra.mxu0 %v423
      %v1288 = vpop.f32.mrf.mxu0
      %v1289 = vadd.f32 0.0, %v1288
      %1290 = vmatmul.f32.gmra.mxu0 %v425
      %v1291 = vpop.f32.mrf.mxu0
      %v1292 = vadd.f32 0.0, %v1291
      %1293 = vmatmul.f32.gmra.mxu0 %v427
      %v1294 = vpop.f32.mrf.mxu0
      %v1295 = vadd.f32 0.0, %v1294
      %1296 = vmatmul.f32.gmra.mxu0 %v429
      %v1297 = vpop.f32.mrf.mxu0
      %v1298 = vadd.f32 0.0, %v1297
      %1299 = vmatmul.f32.gmra.mxu0 %v431
      %v1300 = vpop.f32.mrf.mxu0
      %v1301 = vadd.f32 0.0, %v1300
      %1302 = vmatmul.f32.gmra.mxu0 %v1189
      %v1303 = vpop.f32.mrf.mxu0
      %v1304 = vadd.f32 0.0, %v1303
      %1305 = vmatmul.f32.gmra.mxu0 %v1191
      %v1306 = vpop.f32.mrf.mxu0
      %v1307 = vadd.f32 0.0, %v1306
      %1308 = vdwg.mxu0
      %v1309 = vadd.f32 %v1149, %v1214
      %v1310 = vadd.f32 %v1150, %v1217
      %v1311 = vadd.f32 %v1151, %v1220
      %v1312 = vadd.f32 %v1152, %v1223
      %v1313 = vadd.f32 %v1153, %v1226
      %v1314 = vadd.f32 %v1154, %v1229
      %v1315 = vadd.f32 %v1155, %v1232
      %v1316 = vadd.f32 %v1156, %v1235
      %v1317 = vadd.f32 %v1157, %v1238
      %v1318 = vadd.f32 %v1158, %v1241
      %v1319 = vadd.f32 %v1159, %v1244
      %v1320 = vadd.f32 %v1160, %v1247
      %v1321 = vadd.f32 %v1161, %v1250
      %v1322 = vadd.f32 %v1162, %v1253
      %v1323 = vadd.f32 %v1163, %v1256
      %v1324 = vadd.f32 %v1164, %v1259
      %v1325 = vadd.f32 %v1165, %v1262
      %v1326 = vadd.f32 %v1166, %v1265
      %v1327 = vadd.f32 %v1167, %v1268
      %v1328 = vadd.f32 %v1168, %v1271
      %v1329 = vadd.f32 %v1169, %v1274
      %v1330 = vadd.f32 %v1170, %v1277
      %v1331 = vadd.f32 %v1171, %v1280
      %v1332 = vadd.f32 %v1172, %v1283
      %v1333 = vadd.f32 %v1173, %v1286
      %v1334 = vadd.f32 %v1174, %v1289
      %v1335 = vadd.f32 %v1175, %v1292
      %v1336 = vadd.f32 %v1176, %v1295
      %v1337 = vadd.f32 %v1177, %v1298
      %v1338 = vadd.f32 %v1178, %v1301
      %v1339 = vadd.f32 %v1179, %v1304
      %v1340 = vadd.f32 %v1180, %v1307
      %v1341 = vrot.slane %v230, 2
      %v1342 = vrot.slane %v231, 2
      %v1343 = vsel %vm730, %v1341, %v1342
      %v1344 = vrot.slane %v232, 2
      %v1345 = vsel %vm730, %v1342, %v1344
      %s1346 = scalar_lea.vmem %s1, 20
      %v1347 = vld [vmem:[%s1346] sm:$0xf]
      %v1348 = vsel %vm368, %v1343, 0
      %v1350 = vsel %vm368, %v1345, 0
      %v1353 = vsel %vm433, %v1347, 0
      %1355 = vmatpush.msra.mxu0 0.0
      %1356 = vmatpush.msra.mxu0 0.0
      %1357 = vmatpush.msra.mxu0 0.0
      %1358 = vmatpush.msra.mxu0 0.0
      %1359 = vmatpush.msra.mxu0 0.0
      %1360 = vmatpush.msra.mxu0 0.0
      %1361 = vmatpush.msra.mxu0 0.0
      %1362 = vmatpush.msra.mxu0 0.0
      %1363 = vmatpush.msra.mxu0 0.0
      %1364 = vmatpush.msra.mxu0 0.0
      %1365 = vmatpush.msra.mxu0 0.0
      %1366 = vmatpush.msra.mxu0 0.0
      %1367 = vmatpush.msra.mxu0 0.0
      %1368 = vmatpush.msra.mxu0 0.0
      %1369 = vmatpush.msra.mxu0 0.0
      %1370 = vmatpush.msra.mxu0 %v1353
      %1371 = vmatmul.f32.gmra.mxu0 %v817
      %v1372 = vpop.f32.mrf.mxu0
      %v1373 = vadd.f32 0.0, %v1372
      %1374 = vmatmul.f32.gmra.mxu0 %v819
      %v1375 = vpop.f32.mrf.mxu0
      %v1376 = vadd.f32 0.0, %v1375
      %1377 = vmatmul.f32.gmra.mxu0 %v821
      %v1378 = vpop.f32.mrf.mxu0
      %v1379 = vadd.f32 0.0, %v1378
      %1380 = vmatmul.f32.gmra.mxu0 %v823
      %v1381 = vpop.f32.mrf.mxu0
      %v1382 = vadd.f32 0.0, %v1381
      %1383 = vmatmul.f32.gmra.mxu0 %v825
      %v1384 = vpop.f32.mrf.mxu0
      %v1385 = vadd.f32 0.0, %v1384
      %1386 = vmatmul.f32.gmra.mxu0 %v827
      %v1387 = vpop.f32.mrf.mxu0
      %v1388 = vadd.f32 0.0, %v1387
      %1389 = vmatmul.f32.gmra.mxu0 %v829
      %v1390 = vpop.f32.mrf.mxu0
      %v1391 = vadd.f32 0.0, %v1390
      %1392 = vmatmul.f32.gmra.mxu0 %v831
      %v1393 = vpop.f32.mrf.mxu0
      %v1394 = vadd.f32 0.0, %v1393
      %1395 = vmatmul.f32.gmra.mxu0 %v833
      %v1396 = vpop.f32.mrf.mxu0
      %v1397 = vadd.f32 0.0, %v1396
      %1398 = vmatmul.f32.gmra.mxu0 %v835
      %v1399 = vpop.f32.mrf.mxu0
      %v1400 = vadd.f32 0.0, %v1399
      %1401 = vmatmul.f32.gmra.mxu0 %v837
      %v1402 = vpop.f32.mrf.mxu0
      %v1403 = vadd.f32 0.0, %v1402
      %1404 = vmatmul.f32.gmra.mxu0 %v839
      %v1405 = vpop.f32.mrf.mxu0
      %v1406 = vadd.f32 0.0, %v1405
      %1407 = vmatmul.f32.gmra.mxu0 %v841
      %v1408 = vpop.f32.mrf.mxu0
      %v1409 = vadd.f32 0.0, %v1408
      %1410 = vmatmul.f32.gmra.mxu0 %v843
      %v1411 = vpop.f32.mrf.mxu0
      %v1412 = vadd.f32 0.0, %v1411
      %1413 = vmatmul.f32.gmra.mxu0 %v845
      %v1414 = vpop.f32.mrf.mxu0
      %v1415 = vadd.f32 0.0, %v1414
      %1416 = vmatmul.f32.gmra.mxu0 %v847
      %v1417 = vpop.f32.mrf.mxu0
      %v1418 = vadd.f32 0.0, %v1417
      %1419 = vmatmul.f32.gmra.mxu0 %v849
      %v1420 = vpop.f32.mrf.mxu0
      %v1421 = vadd.f32 0.0, %v1420
      %1422 = vmatmul.f32.gmra.mxu0 %v851
      %v1423 = vpop.f32.mrf.mxu0
      %v1424 = vadd.f32 0.0, %v1423
      %1425 = vmatmul.f32.gmra.mxu0 %v853
      %v1426 = vpop.f32.mrf.mxu0
      %v1427 = vadd.f32 0.0, %v1426
      %1428 = vmatmul.f32.gmra.mxu0 %v855
      %v1429 = vpop.f32.mrf.mxu0
      %v1430 = vadd.f32 0.0, %v1429
      %1431 = vmatmul.f32.gmra.mxu0 %v857
      %v1432 = vpop.f32.mrf.mxu0
      %v1433 = vadd.f32 0.0, %v1432
      %1434 = vmatmul.f32.gmra.mxu0 %v859
      %v1435 = vpop.f32.mrf.mxu0
      %v1436 = vadd.f32 0.0, %v1435
      %1437 = vmatmul.f32.gmra.mxu0 %v861
      %v1438 = vpop.f32.mrf.mxu0
      %v1439 = vadd.f32 0.0, %v1438
      %1440 = vmatmul.f32.gmra.mxu0 %v863
      %v1441 = vpop.f32.mrf.mxu0
      %v1442 = vadd.f32 0.0, %v1441
      %1443 = vmatmul.f32.gmra.mxu0 %v865
      %v1444 = vpop.f32.mrf.mxu0
      %v1445 = vadd.f32 0.0, %v1444
      %1446 = vmatmul.f32.gmra.mxu0 %v867
      %v1447 = vpop.f32.mrf.mxu0
      %v1448 = vadd.f32 0.0, %v1447
      %1449 = vmatmul.f32.gmra.mxu0 %v869
      %v1450 = vpop.f32.mrf.mxu0
      %v1451 = vadd.f32 0.0, %v1450
      %1452 = vmatmul.f32.gmra.mxu0 %v871
      %v1453 = vpop.f32.mrf.mxu0
      %v1454 = vadd.f32 0.0, %v1453
      %1455 = vmatmul.f32.gmra.mxu0 %v873
      %v1456 = vpop.f32.mrf.mxu0
      %v1457 = vadd.f32 0.0, %v1456
      %1458 = vmatmul.f32.gmra.mxu0 %v875
      %v1459 = vpop.f32.mrf.mxu0
      %v1460 = vadd.f32 0.0, %v1459
      %1461 = vmatmul.f32.gmra.mxu0 %v1348
      %v1462 = vpop.f32.mrf.mxu0
      %v1463 = vadd.f32 0.0, %v1462
      %1464 = vmatmul.f32.gmra.mxu0 %v1350
      %v1465 = vpop.f32.mrf.mxu0
      %v1466 = vadd.f32 0.0, %v1465
      %1467 = vdwg.mxu0
      %v1468 = vadd.f32 %v1309, %v1373
      %v1469 = vadd.f32 %v1310, %v1376
      %v1470 = vadd.f32 %v1311, %v1379
      %v1471 = vadd.f32 %v1312, %v1382
      %v1472 = vadd.f32 %v1313, %v1385
      %v1473 = vadd.f32 %v1314, %v1388
      %v1474 = vadd.f32 %v1315, %v1391
      %v1475 = vadd.f32 %v1316, %v1394
      %v1476 = vadd.f32 %v1317, %v1397
      %v1477 = vadd.f32 %v1318, %v1400
      %v1478 = vadd.f32 %v1319, %v1403
      %v1479 = vadd.f32 %v1320, %v1406
      %v1480 = vadd.f32 %v1321, %v1409
      %v1481 = vadd.f32 %v1322, %v1412
      %v1482 = vadd.f32 %v1323, %v1415
      %v1483 = vadd.f32 %v1324, %v1418
      %v1484 = vadd.f32 %v1325, %v1421
      %v1485 = vadd.f32 %v1326, %v1424
      %v1486 = vadd.f32 %v1327, %v1427
      %v1487 = vadd.f32 %v1328, %v1430
      %v1488 = vadd.f32 %v1329, %v1433
      %v1489 = vadd.f32 %v1330, %v1436
      %v1490 = vadd.f32 %v1331, %v1439
      %v1491 = vadd.f32 %v1332, %v1442
      %v1492 = vadd.f32 %v1333, %v1445
      %v1493 = vadd.f32 %v1334, %v1448
      %v1494 = vadd.f32 %v1335, %v1451
      %v1495 = vadd.f32 %v1336, %v1454
      %v1496 = vadd.f32 %v1337, %v1457
      %v1497 = vadd.f32 %v1338, %v1460
      %v1498 = vadd.f32 %v1339, %v1463
      %v1499 = vadd.f32 %v1340, %v1466
      %s1500 = scalar_lea.vmem %s1, 24
      %v1501 = vld [vmem:[%s1500] sm:$0xf]
      %v1503 = vsel %vm368, %v233, 0
      %v1506 = vsel %vm368, %v234, 0
      %v1509 = vsel %vm433, %v1501, 0
      %1511 = vmatpush.msra.mxu0 0.0
      %1512 = vmatpush.msra.mxu0 0.0
      %1513 = vmatpush.msra.mxu0 0.0
      %1514 = vmatpush.msra.mxu0 0.0
      %1515 = vmatpush.msra.mxu0 0.0
      %1516 = vmatpush.msra.mxu0 0.0
      %1517 = vmatpush.msra.mxu0 0.0
      %1518 = vmatpush.msra.mxu0 0.0
      %1519 = vmatpush.msra.mxu0 0.0
      %1520 = vmatpush.msra.mxu0 0.0
      %1521 = vmatpush.msra.mxu0 0.0
      %1522 = vmatpush.msra.mxu0 0.0
      %1523 = vmatpush.msra.mxu0 0.0
      %1524 = vmatpush.msra.mxu0 0.0
      %1525 = vmatpush.msra.mxu0 0.0
      %1526 = vmatpush.msra.mxu0 %v1509
      %1527 = vmatmul.f32.gmra.mxu0 %v558
      %v1528 = vpop.f32.mrf.mxu0
      %v1529 = vadd.f32 0.0, %v1528
      %1530 = vmatmul.f32.gmra.mxu0 %v560
      %v1531 = vpop.f32.mrf.mxu0
      %v1532 = vadd.f32 0.0, %v1531
      %1533 = vmatmul.f32.gmra.mxu0 %v562
      %v1534 = vpop.f32.mrf.mxu0
      %v1535 = vadd.f32 0.0, %v1534
      %1536 = vmatmul.f32.gmra.mxu0 %v564
      %v1537 = vpop.f32.mrf.mxu0
      %v1538 = vadd.f32 0.0, %v1537
      %1539 = vmatmul.f32.gmra.mxu0 %v566
      %v1540 = vpop.f32.mrf.mxu0
      %v1541 = vadd.f32 0.0, %v1540
      %1542 = vmatmul.f32.gmra.mxu0 %v568
      %v1543 = vpop.f32.mrf.mxu0
      %v1544 = vadd.f32 0.0, %v1543
      %1545 = vmatmul.f32.gmra.mxu0 %v570
      %v1546 = vpop.f32.mrf.mxu0
      %v1547 = vadd.f32 0.0, %v1546
      %1548 = vmatmul.f32.gmra.mxu0 %v572
      %v1549 = vpop.f32.mrf.mxu0
      %v1550 = vadd.f32 0.0, %v1549
      %1551 = vmatmul.f32.gmra.mxu0 %v574
      %v1552 = vpop.f32.mrf.mxu0
      %v1553 = vadd.f32 0.0, %v1552
      %1554 = vmatmul.f32.gmra.mxu0 %v576
      %v1555 = vpop.f32.mrf.mxu0
      %v1556 = vadd.f32 0.0, %v1555
      %1557 = vmatmul.f32.gmra.mxu0 %v578
      %v1558 = vpop.f32.mrf.mxu0
      %v1559 = vadd.f32 0.0, %v1558
      %1560 = vmatmul.f32.gmra.mxu0 %v580
      %v1561 = vpop.f32.mrf.mxu0
      %v1562 = vadd.f32 0.0, %v1561
      %1563 = vmatmul.f32.gmra.mxu0 %v582
      %v1564 = vpop.f32.mrf.mxu0
      %v1565 = vadd.f32 0.0, %v1564
      %1566 = vmatmul.f32.gmra.mxu0 %v584
      %v1567 = vpop.f32.mrf.mxu0
      %v1568 = vadd.f32 0.0, %v1567
      %1569 = vmatmul.f32.gmra.mxu0 %v586
      %v1570 = vpop.f32.mrf.mxu0
      %v1571 = vadd.f32 0.0, %v1570
      %1572 = vmatmul.f32.gmra.mxu0 %v588
      %v1573 = vpop.f32.mrf.mxu0
      %v1574 = vadd.f32 0.0, %v1573
      %1575 = vmatmul.f32.gmra.mxu0 %v590
      %v1576 = vpop.f32.mrf.mxu0
      %v1577 = vadd.f32 0.0, %v1576
      %1578 = vmatmul.f32.gmra.mxu0 %v592
      %v1579 = vpop.f32.mrf.mxu0
      %v1580 = vadd.f32 0.0, %v1579
      %1581 = vmatmul.f32.gmra.mxu0 %v594
      %v1582 = vpop.f32.mrf.mxu0
      %v1583 = vadd.f32 0.0, %v1582
      %1584 = vmatmul.f32.gmra.mxu0 %v596
      %v1585 = vpop.f32.mrf.mxu0
      %v1586 = vadd.f32 0.0, %v1585
      %1587 = vmatmul.f32.gmra.mxu0 %v598
      %v1588 = vpop.f32.mrf.mxu0
      %v1589 = vadd.f32 0.0, %v1588
      %1590 = vmatmul.f32.gmra.mxu0 %v600
      %v1591 = vpop.f32.mrf.mxu0
      %v1592 = vadd.f32 0.0, %v1591
      %1593 = vmatmul.f32.gmra.mxu0 %v602
      %v1594 = vpop.f32.mrf.mxu0
      %v1595 = vadd.f32 0.0, %v1594
      %1596 = vmatmul.f32.gmra.mxu0 %v604
      %v1597 = vpop.f32.mrf.mxu0
      %v1598 = vadd.f32 0.0, %v1597
      %1599 = vmatmul.f32.gmra.mxu0 %v606
      %v1600 = vpop.f32.mrf.mxu0
      %v1601 = vadd.f32 0.0, %v1600
      %1602 = vmatmul.f32.gmra.mxu0 %v608
      %v1603 = vpop.f32.mrf.mxu0
      %v1604 = vadd.f32 0.0, %v1603
      %1605 = vmatmul.f32.gmra.mxu0 %v610
      %v1606 = vpop.f32.mrf.mxu0
      %v1607 = vadd.f32 0.0, %v1606
      %1608 = vmatmul.f32.gmra.mxu0 %v612
      %v1609 = vpop.f32.mrf.mxu0
      %v1610 = vadd.f32 0.0, %v1609
      %1611 = vmatmul.f32.gmra.mxu0 %v1028
      %v1612 = vpop.f32.mrf.mxu0
      %v1613 = vadd.f32 0.0, %v1612
      %1614 = vmatmul.f32.gmra.mxu0 %v1031
      %v1615 = vpop.f32.mrf.mxu0
      %v1616 = vadd.f32 0.0, %v1615
      %1617 = vmatmul.f32.gmra.mxu0 %v1503
      %v1618 = vpop.f32.mrf.mxu0
      %v1619 = vadd.f32 0.0, %v1618
      %1620 = vmatmul.f32.gmra.mxu0 %v1506
      %v1621 = vpop.f32.mrf.mxu0
      %v1622 = vadd.f32 0.0, %v1621
      %1623 = vdwg.mxu0
      %v1624 = vadd.f32 %v1468, %v1529
      %v1625 = vadd.f32 %v1469, %v1532
      %v1626 = vadd.f32 %v1470, %v1535
      %v1627 = vadd.f32 %v1471, %v1538
      %v1628 = vadd.f32 %v1472, %v1541
      %v1629 = vadd.f32 %v1473, %v1544
      %v1630 = vadd.f32 %v1474, %v1547
      %v1631 = vadd.f32 %v1475, %v1550
      %v1632 = vadd.f32 %v1476, %v1553
      %v1633 = vadd.f32 %v1477, %v1556
      %v1634 = vadd.f32 %v1478, %v1559
      %v1635 = vadd.f32 %v1479, %v1562
      %v1636 = vadd.f32 %v1480, %v1565
      %v1637 = vadd.f32 %v1481, %v1568
      %v1638 = vadd.f32 %v1482, %v1571
      %v1639 = vadd.f32 %v1483, %v1574
      %v1640 = vadd.f32 %v1484, %v1577
      %v1641 = vadd.f32 %v1485, %v1580
      %v1642 = vadd.f32 %v1486, %v1583
      %v1643 = vadd.f32 %v1487, %v1586
      %v1644 = vadd.f32 %v1488, %v1589
      %v1645 = vadd.f32 %v1489, %v1592
      %v1646 = vadd.f32 %v1490, %v1595
      %v1647 = vadd.f32 %v1491, %v1598
      %v1648 = vadd.f32 %v1492, %v1601
      %v1649 = vadd.f32 %v1493, %v1604
      %v1650 = vadd.f32 %v1494, %v1607
      %v1651 = vadd.f32 %v1495, %v1610
      %v1652 = vadd.f32 %v1496, %v1613
      %v1653 = vadd.f32 %v1497, %v1616
      %v1654 = vadd.f32 %v1498, %v1619
      %v1655 = vadd.f32 %v1499, %v1622
      %v1657 = vrot.slane %v233, 1
      %v1658 = vrot.slane %v234, 1
      %v1659 = vsel %vm285, %v1657, %v1658
      %v1660 = vrot.slane %v235, 1
      %v1661 = vsel %vm285, %v1658, %v1660
      %s1662 = scalar_lea.vmem %s1, 28
      %v1663 = vld [vmem:[%s1662] sm:$0xf]
      %v1664 = vsel %vm368, %v1659, 0
      %v1666 = vsel %vm368, %v1661, 0
      %v1669 = vsel %vm433, %v1663, 0
      %1671 = vmatpush.msra.mxu0 0.0
      %1672 = vmatpush.msra.mxu0 0.0
      %1673 = vmatpush.msra.mxu0 0.0
      %1674 = vmatpush.msra.mxu0 0.0
      %1675 = vmatpush.msra.mxu0 0.0
      %1676 = vmatpush.msra.mxu0 0.0
      %1677 = vmatpush.msra.mxu0 0.0
      %1678 = vmatpush.msra.mxu0 0.0
      %1679 = vmatpush.msra.mxu0 0.0
      %1680 = vmatpush.msra.mxu0 0.0
      %1681 = vmatpush.msra.mxu0 0.0
      %1682 = vmatpush.msra.mxu0 0.0
      %1683 = vmatpush.msra.mxu0 0.0
      %1684 = vmatpush.msra.mxu0 0.0
      %1685 = vmatpush.msra.mxu0 0.0
      %1686 = vmatpush.msra.mxu0 %v1669
      %1687 = vmatmul.f32.gmra.mxu0 %v377
      %v1688 = vpop.f32.mrf.mxu0
      %v1689 = vadd.f32 0.0, %v1688
      %1690 = vmatmul.f32.gmra.mxu0 %v379
      %v1691 = vpop.f32.mrf.mxu0
      %v1692 = vadd.f32 0.0, %v1691
      %1693 = vmatmul.f32.gmra.mxu0 %v381
      %v1694 = vpop.f32.mrf.mxu0
      %v1695 = vadd.f32 0.0, %v1694
      %1696 = vmatmul.f32.gmra.mxu0 %v383
      %v1697 = vpop.f32.mrf.mxu0
      %v1698 = vadd.f32 0.0, %v1697
      %1699 = vmatmul.f32.gmra.mxu0 %v385
      %v1700 = vpop.f32.mrf.mxu0
      %v1701 = vadd.f32 0.0, %v1700
      %1702 = vmatmul.f32.gmra.mxu0 %v387
      %v1703 = vpop.f32.mrf.mxu0
      %v1704 = vadd.f32 0.0, %v1703
      %1705 = vmatmul.f32.gmra.mxu0 %v389
      %v1706 = vpop.f32.mrf.mxu0
      %v1707 = vadd.f32 0.0, %v1706
      %1708 = vmatmul.f32.gmra.mxu0 %v391
      %v1709 = vpop.f32.mrf.mxu0
      %v1710 = vadd.f32 0.0, %v1709
      %1711 = vmatmul.f32.gmra.mxu0 %v393
      %v1712 = vpop.f32.mrf.mxu0
      %v1713 = vadd.f32 0.0, %v1712
      %1714 = vmatmul.f32.gmra.mxu0 %v395
      %v1715 = vpop.f32.mrf.mxu0
      %v1716 = vadd.f32 0.0, %v1715
      %1717 = vmatmul.f32.gmra.mxu0 %v397
      %v1718 = vpop.f32.mrf.mxu0
      %v1719 = vadd.f32 0.0, %v1718
      %1720 = vmatmul.f32.gmra.mxu0 %v399
      %v1721 = vpop.f32.mrf.mxu0
      %v1722 = vadd.f32 0.0, %v1721
      %1723 = vmatmul.f32.gmra.mxu0 %v401
      %v1724 = vpop.f32.mrf.mxu0
      %v1725 = vadd.f32 0.0, %v1724
      %1726 = vmatmul.f32.gmra.mxu0 %v403
      %v1727 = vpop.f32.mrf.mxu0
      %v1728 = vadd.f32 0.0, %v1727
      %1729 = vmatmul.f32.gmra.mxu0 %v405
      %v1730 = vpop.f32.mrf.mxu0
      %v1731 = vadd.f32 0.0, %v1730
      %1732 = vmatmul.f32.gmra.mxu0 %v407
      %v1733 = vpop.f32.mrf.mxu0
      %v1734 = vadd.f32 0.0, %v1733
      %1735 = vmatmul.f32.gmra.mxu0 %v409
      %v1736 = vpop.f32.mrf.mxu0
      %v1737 = vadd.f32 0.0, %v1736
      %1738 = vmatmul.f32.gmra.mxu0 %v411
      %v1739 = vpop.f32.mrf.mxu0
      %v1740 = vadd.f32 0.0, %v1739
      %1741 = vmatmul.f32.gmra.mxu0 %v413
      %v1742 = vpop.f32.mrf.mxu0
      %v1743 = vadd.f32 0.0, %v1742
      %1744 = vmatmul.f32.gmra.mxu0 %v415
      %v1745 = vpop.f32.mrf.mxu0
      %v1746 = vadd.f32 0.0, %v1745
      %1747 = vmatmul.f32.gmra.mxu0 %v417
      %v1748 = vpop.f32.mrf.mxu0
      %v1749 = vadd.f32 0.0, %v1748
      %1750 = vmatmul.f32.gmra.mxu0 %v419
      %v1751 = vpop.f32.mrf.mxu0
      %v1752 = vadd.f32 0.0, %v1751
      %1753 = vmatmul.f32.gmra.mxu0 %v421
      %v1754 = vpop.f32.mrf.mxu0
      %v1755 = vadd.f32 0.0, %v1754
      %1756 = vmatmul.f32.gmra.mxu0 %v423
      %v1757 = vpop.f32.mrf.mxu0
      %v1758 = vadd.f32 0.0, %v1757
      %1759 = vmatmul.f32.gmra.mxu0 %v425
      %v1760 = vpop.f32.mrf.mxu0
      %v1761 = vadd.f32 0.0, %v1760
      %1762 = vmatmul.f32.gmra.mxu0 %v427
      %v1763 = vpop.f32.mrf.mxu0
      %v1764 = vadd.f32 0.0, %v1763
      %1765 = vmatmul.f32.gmra.mxu0 %v429
      %v1766 = vpop.f32.mrf.mxu0
      %v1767 = vadd.f32 0.0, %v1766
      %1768 = vmatmul.f32.gmra.mxu0 %v431
      %v1769 = vpop.f32.mrf.mxu0
      %v1770 = vadd.f32 0.0, %v1769
      %1771 = vmatmul.f32.gmra.mxu0 %v1189
      %v1772 = vpop.f32.mrf.mxu0
      %v1773 = vadd.f32 0.0, %v1772
      %1774 = vmatmul.f32.gmra.mxu0 %v1191
      %v1775 = vpop.f32.mrf.mxu0
      %v1776 = vadd.f32 0.0, %v1775
      %1777 = vmatmul.f32.gmra.mxu0 %v1664
      %v1778 = vpop.f32.mrf.mxu0
      %v1779 = vadd.f32 0.0, %v1778
      %1780 = vmatmul.f32.gmra.mxu0 %v1666
      %v1781 = vpop.f32.mrf.mxu0
      %v1782 = vadd.f32 0.0, %v1781
      %1783 = vdwg.mxu0
      %v1784 = vadd.f32 %v1624, %v1689
      %v1785 = vadd.f32 %v1625, %v1692
      %v1786 = vadd.f32 %v1626, %v1695
      %v1787 = vadd.f32 %v1627, %v1698
      %v1788 = vadd.f32 %v1628, %v1701
      %v1789 = vadd.f32 %v1629, %v1704
      %v1790 = vadd.f32 %v1630, %v1707
      %v1791 = vadd.f32 %v1631, %v1710
      %v1792 = vadd.f32 %v1632, %v1713
      %v1793 = vadd.f32 %v1633, %v1716
      %v1794 = vadd.f32 %v1634, %v1719
      %v1795 = vadd.f32 %v1635, %v1722
      %v1796 = vadd.f32 %v1636, %v1725
      %v1797 = vadd.f32 %v1637, %v1728
      %v1798 = vadd.f32 %v1638, %v1731
      %v1799 = vadd.f32 %v1639, %v1734
      %v1800 = vadd.f32 %v1640, %v1737
      %v1801 = vadd.f32 %v1641, %v1740
      %v1802 = vadd.f32 %v1642, %v1743
      %v1803 = vadd.f32 %v1643, %v1746
      %v1804 = vadd.f32 %v1644, %v1749
      %v1805 = vadd.f32 %v1645, %v1752
      %v1806 = vadd.f32 %v1646, %v1755
      %v1807 = vadd.f32 %v1647, %v1758
      %v1808 = vadd.f32 %v1648, %v1761
      %v1809 = vadd.f32 %v1649, %v1764
      %v1810 = vadd.f32 %v1650, %v1767
      %v1811 = vadd.f32 %v1651, %v1770
      %v1812 = vadd.f32 %v1652, %v1773
      %v1813 = vadd.f32 %v1653, %v1776
      %v1814 = vadd.f32 %v1654, %v1779
      %v1815 = vadd.f32 %v1655, %v1782
      %v1816 = vrot.slane %v233, 2
      %v1817 = vrot.slane %v234, 2
      %v1818 = vsel %vm730, %v1816, %v1817
      %v1819 = vrot.slane %v235, 2
      %v1820 = vsel %vm730, %v1817, %v1819
      %s1821 = scalar_lea.vmem %s1, 32
      %v1822 = vld [vmem:[%s1821] sm:$0xf]
      %v1823 = vsel %vm368, %v1818, 0
      %v1825 = vsel %vm368, %v1820, 0
      %v1828 = vsel %vm433, %v1822, 0
      %1830 = vmatpush.msra.mxu0 0.0
      %1831 = vmatpush.msra.mxu0 0.0
      %1832 = vmatpush.msra.mxu0 0.0
      %1833 = vmatpush.msra.mxu0 0.0
      %1834 = vmatpush.msra.mxu0 0.0
      %1835 = vmatpush.msra.mxu0 0.0
      %1836 = vmatpush.msra.mxu0 0.0
      %1837 = vmatpush.msra.mxu0 0.0
      %1838 = vmatpush.msra.mxu0 0.0
      %1839 = vmatpush.msra.mxu0 0.0
      %1840 = vmatpush.msra.mxu0 0.0
      %1841 = vmatpush.msra.mxu0 0.0
      %1842 = vmatpush.msra.mxu0 0.0
      %1843 = vmatpush.msra.mxu0 0.0
      %1844 = vmatpush.msra.mxu0 0.0
      %1845 = vmatpush.msra.mxu0 %v1828
      %1846 = vmatmul.f32.gmra.mxu0 %v821
      %v1847 = vpop.f32.mrf.mxu0
      %v1848 = vadd.f32 0.0, %v1847
      %1849 = vmatmul.f32.gmra.mxu0 %v823
      %v1850 = vpop.f32.mrf.mxu0
      %v1851 = vadd.f32 0.0, %v1850
      %1852 = vmatmul.f32.gmra.mxu0 %v825
      %v1853 = vpop.f32.mrf.mxu0
      %v1854 = vadd.f32 0.0, %v1853
      %1855 = vmatmul.f32.gmra.mxu0 %v827
      %v1856 = vpop.f32.mrf.mxu0
      %v1857 = vadd.f32 0.0, %v1856
      %1858 = vmatmul.f32.gmra.mxu0 %v829
      %v1859 = vpop.f32.mrf.mxu0
      %v1860 = vadd.f32 0.0, %v1859
      %1861 = vmatmul.f32.gmra.mxu0 %v831
      %v1862 = vpop.f32.mrf.mxu0
      %v1863 = vadd.f32 0.0, %v1862
      %1864 = vmatmul.f32.gmra.mxu0 %v833
      %v1865 = vpop.f32.mrf.mxu0
      %v1866 = vadd.f32 0.0, %v1865
      %1867 = vmatmul.f32.gmra.mxu0 %v835
      %v1868 = vpop.f32.mrf.mxu0
      %v1869 = vadd.f32 0.0, %v1868
      %1870 = vmatmul.f32.gmra.mxu0 %v837
      %v1871 = vpop.f32.mrf.mxu0
      %v1872 = vadd.f32 0.0, %v1871
      %1873 = vmatmul.f32.gmra.mxu0 %v839
      %v1874 = vpop.f32.mrf.mxu0
      %v1875 = vadd.f32 0.0, %v1874
      %1876 = vmatmul.f32.gmra.mxu0 %v841
      %v1877 = vpop.f32.mrf.mxu0
      %v1878 = vadd.f32 0.0, %v1877
      %1879 = vmatmul.f32.gmra.mxu0 %v843
      %v1880 = vpop.f32.mrf.mxu0
      %v1881 = vadd.f32 0.0, %v1880
      %1882 = vmatmul.f32.gmra.mxu0 %v845
      %v1883 = vpop.f32.mrf.mxu0
      %v1884 = vadd.f32 0.0, %v1883
      %1885 = vmatmul.f32.gmra.mxu0 %v847
      %v1886 = vpop.f32.mrf.mxu0
      %v1887 = vadd.f32 0.0, %v1886
      %1888 = vmatmul.f32.gmra.mxu0 %v849
      %v1889 = vpop.f32.mrf.mxu0
      %v1890 = vadd.f32 0.0, %v1889
      %1891 = vmatmul.f32.gmra.mxu0 %v851
      %v1892 = vpop.f32.mrf.mxu0
      %v1893 = vadd.f32 0.0, %v1892
      %1894 = vmatmul.f32.gmra.mxu0 %v853
      %v1895 = vpop.f32.mrf.mxu0
      %v1896 = vadd.f32 0.0, %v1895
      %1897 = vmatmul.f32.gmra.mxu0 %v855
      %v1898 = vpop.f32.mrf.mxu0
      %v1899 = vadd.f32 0.0, %v1898
      %1900 = vmatmul.f32.gmra.mxu0 %v857
      %v1901 = vpop.f32.mrf.mxu0
      %v1902 = vadd.f32 0.0, %v1901
      %1903 = vmatmul.f32.gmra.mxu0 %v859
      %v1904 = vpop.f32.mrf.mxu0
      %v1905 = vadd.f32 0.0, %v1904
      %1906 = vmatmul.f32.gmra.mxu0 %v861
      %v1907 = vpop.f32.mrf.mxu0
      %v1908 = vadd.f32 0.0, %v1907
      %1909 = vmatmul.f32.gmra.mxu0 %v863
      %v1910 = vpop.f32.mrf.mxu0
      %v1911 = vadd.f32 0.0, %v1910
      %1912 = vmatmul.f32.gmra.mxu0 %v865
      %v1913 = vpop.f32.mrf.mxu0
      %v1914 = vadd.f32 0.0, %v1913
      %1915 = vmatmul.f32.gmra.mxu0 %v867
      %v1916 = vpop.f32.mrf.mxu0
      %v1917 = vadd.f32 0.0, %v1916
      %1918 = vmatmul.f32.gmra.mxu0 %v869
      %v1919 = vpop.f32.mrf.mxu0
      %v1920 = vadd.f32 0.0, %v1919
      %1921 = vmatmul.f32.gmra.mxu0 %v871
      %v1922 = vpop.f32.mrf.mxu0
      %v1923 = vadd.f32 0.0, %v1922
      %1924 = vmatmul.f32.gmra.mxu0 %v873
      %v1925 = vpop.f32.mrf.mxu0
      %v1926 = vadd.f32 0.0, %v1925
      %1927 = vmatmul.f32.gmra.mxu0 %v875
      %v1928 = vpop.f32.mrf.mxu0
      %v1929 = vadd.f32 0.0, %v1928
      %1930 = vmatmul.f32.gmra.mxu0 %v1348
      %v1931 = vpop.f32.mrf.mxu0
      %v1932 = vadd.f32 0.0, %v1931
      %1933 = vmatmul.f32.gmra.mxu0 %v1350
      %v1934 = vpop.f32.mrf.mxu0
      %v1935 = vadd.f32 0.0, %v1934
      %1936 = vmatmul.f32.gmra.mxu0 %v1823
      %v1937 = vpop.f32.mrf.mxu0
      %v1938 = vadd.f32 0.0, %v1937
      %1939 = vmatmul.f32.gmra.mxu0 %v1825
      %v1940 = vpop.f32.mrf.mxu0
      %v1941 = vadd.f32 0.0, %v1940
      %1942 = vdwg.mxu0
      %v1943 = vadd.f32 %v1784, %v1848
      %v1944 = vadd.f32 %v1785, %v1851
      %v1945 = vadd.f32 %v1786, %v1854
      %v1946 = vadd.f32 %v1787, %v1857
      %v1947 = vadd.f32 %v1788, %v1860
      %v1948 = vadd.f32 %v1789, %v1863
      %v1949 = vadd.f32 %v1790, %v1866
      %v1950 = vadd.f32 %v1791, %v1869
      %v1951 = vadd.f32 %v1792, %v1872
      %v1952 = vadd.f32 %v1793, %v1875
      %v1953 = vadd.f32 %v1794, %v1878
      %v1954 = vadd.f32 %v1795, %v1881
      %v1955 = vadd.f32 %v1796, %v1884
      %v1956 = vadd.f32 %v1797, %v1887
      %v1957 = vadd.f32 %v1798, %v1890
      %v1958 = vadd.f32 %v1799, %v1893
      %v1959 = vadd.f32 %v1800, %v1896
      %v1960 = vadd.f32 %v1801, %v1899
      %v1961 = vadd.f32 %v1802, %v1902
      %v1962 = vadd.f32 %v1803, %v1905
      %v1963 = vadd.f32 %v1804, %v1908
      %v1964 = vadd.f32 %v1805, %v1911
      %v1965 = vadd.f32 %v1806, %v1914
      %v1966 = vadd.f32 %v1807, %v1917
      %v1967 = vadd.f32 %v1808, %v1920
      %v1968 = vadd.f32 %v1809, %v1923
      %v1969 = vadd.f32 %v1810, %v1926
      %v1970 = vadd.f32 %v1811, %v1929
      %v1971 = vadd.f32 %v1812, %v1932
      %v1972 = vadd.f32 %v1813, %v1935
      %v1973 = vadd.f32 %v1814, %v1938
      %v1974 = vadd.f32 %v1815, %v1941
      %1975 = vst [vmem:[%s177] sm:$0xff] %v1943
      %1976 = vst [vmem:[%s177 + $0x8] sm:$0xff] %v1944
      %1977 = vst [vmem:[%s177 + $0x10] sm:$0xff] %v1945
      %1978 = vst [vmem:[%s177 + $0x18] sm:$0xff] %v1946
      %1979 = vst [vmem:[%s177 + $0x20] sm:$0xff] %v1947
      %1980 = vst [vmem:[%s177 + $0x28] sm:$0xff] %v1948
      %1981 = vst [vmem:[%s177 + $0x30] sm:$0xff] %v1949
      %1982 = vst [vmem:[%s177 + $0x38] sm:$0xff] %v1950
      %1983 = vst [vmem:[%s177 + $0x40] sm:$0xff] %v1951
      %1984 = vst [vmem:[%s177 + $0x48] sm:$0xff] %v1952
      %1985 = vst [vmem:[%s177 + $0x50] sm:$0xff] %v1953
      %1986 = vst [vmem:[%s177 + $0x58] sm:$0xff] %v1954
      %1987 = vst [vmem:[%s177 + $0x60] sm:$0xff] %v1955
      %1988 = vst [vmem:[%s177 + $0x68] sm:$0xff] %v1956
      %1989 = vst [vmem:[%s177 + $0x70] sm:$0xff] %v1957
      %1990 = vst [vmem:[%s177 + $0x78] sm:$0xff] %v1958
      %1991 = vst [vmem:[%s177 + $0x80] sm:$0xff] %v1959
      %1992 = vst [vmem:[%s177 + $0x88] sm:$0xff] %v1960
      %1993 = vst [vmem:[%s177 + $0x90] sm:$0xff] %v1961
      %1994 = vst [vmem:[%s177 + $0x98] sm:$0xff] %v1962
      %1995 = vst [vmem:[%s177 + $0xa0] sm:$0xff] %v1963
      %1996 = vst [vmem:[%s177 + $0xa8] sm:$0xff] %v1964
      %1997 = vst [vmem:[%s177 + $0xb0] sm:$0xff] %v1965
      %1998 = vst [vmem:[%s177 + $0xb8] sm:$0xff] %v1966
      %1999 = vst [vmem:[%s177 + $0xc0] sm:$0xff] %v1967
      %2000 = vst [vmem:[%s177 + $0xc8] sm:$0xff] %v1968
      %2001 = vst [vmem:[%s177 + $0xd0] sm:$0xff] %v1969
      %2002 = vst [vmem:[%s177 + $0xd8] sm:$0xff] %v1970
      %2003 = vst [vmem:[%s177 + $0xe0] sm:$0xff] %v1971
      %2004 = vst [vmem:[%s177 + $0xe8] sm:$0xff] %v1972
      %2005 = vst [vmem:[%s177 + $0xf0] sm:$0xff] %v1973
      %2006 = vst [vmem:[%s177 + $0xf8] sm:$0xff] %v1974
      %v2007 = vadd.f32 %v1943, %v1944
      %v2008 = vadd.f32 %v2007, %v1945
      %v2009 = vadd.f32 %v2008, %v1946
      %v2010 = vadd.f32 %v2009, %v1947
      %v2011 = vadd.f32 %v2010, %v1948
      %v2012 = vadd.f32 %v2011, %v1949
      %v2013 = vadd.f32 %v2012, %v1950
      %v2014 = vadd.f32 %v2013, %v1951
      %v2015 = vadd.f32 %v2014, %v1952
      %v2016 = vadd.f32 %v2015, %v1953
      %v2017 = vadd.f32 %v2016, %v1954
      %v2018 = vadd.f32 %v2017, %v1955
      %v2019 = vadd.f32 %v2018, %v1956
      %v2020 = vadd.f32 %v2019, %v1957
      %v2021 = vadd.f32 %v2020, %v1958
      %v2022 = vadd.f32 %v2021, %v1959
      %v2023 = vadd.f32 %v2022, %v1960
      %v2024 = vadd.f32 %v2023, %v1961
      %v2025 = vadd.f32 %v2024, %v1962
      %v2026 = vadd.f32 %v2025, %v1963
      %v2027 = vadd.f32 %v2026, %v1964
      %v2028 = vadd.f32 %v2027, %v1965
      %v2029 = vadd.f32 %v2028, %v1966
      %v2030 = vadd.f32 %v2029, %v1967
      %v2031 = vadd.f32 %v2030, %v1968
      %v2032 = vadd.f32 %v2031, %v1969
      %v2033 = vadd.f32 %v2032, %v1970
      %v2034 = vadd.f32 %v2033, %v1971
      %v2035 = vadd.f32 %v2034, %v1972
      %v2036 = vadd.f32 %v2035, %v1973
      %v2037 = vadd.f32 %v2036, %v1974
      %v2038 = vrot.slane %v2037, 4
      %v2039 = vadd.f32 %v2037, %v2038
      %v2040 = vrot.slane %v2039, 2
      %v2041 = vadd.f32 %v2039, %v2040
      %v2042 = vrot.slane %v2041, 1
      %v2043 = vadd.f32 %v2041, %v2042
      %v2044 = vmul.f32 %v1943, %v1943
      %v2045 = vmul.f32 %v1944, %v1944
      %v2046 = vmul.f32 %v1945, %v1945
      %v2047 = vmul.f32 %v1946, %v1946
      %v2048 = vmul.f32 %v1947, %v1947
      %v2049 = vmul.f32 %v1948, %v1948
      %v2050 = vmul.f32 %v1949, %v1949
      %v2051 = vmul.f32 %v1950, %v1950
      %v2052 = vmul.f32 %v1951, %v1951
      %v2053 = vmul.f32 %v1952, %v1952
      %v2054 = vmul.f32 %v1953, %v1953
      %v2055 = vmul.f32 %v1954, %v1954
      %v2056 = vmul.f32 %v1955, %v1955
      %v2057 = vmul.f32 %v1956, %v1956
      %v2058 = vmul.f32 %v1957, %v1957
      %v2059 = vmul.f32 %v1958, %v1958
      %v2060 = vmul.f32 %v1959, %v1959
      %v2061 = vmul.f32 %v1960, %v1960
      %v2062 = vmul.f32 %v1961, %v1961
      %v2063 = vmul.f32 %v1962, %v1962
      %v2064 = vmul.f32 %v1963, %v1963
      %v2065 = vmul.f32 %v1964, %v1964
      %v2066 = vmul.f32 %v1965, %v1965
      %v2067 = vmul.f32 %v1966, %v1966
      %v2068 = vmul.f32 %v1967, %v1967
      %v2069 = vmul.f32 %v1968, %v1968
      %v2070 = vmul.f32 %v1969, %v1969
      %v2071 = vmul.f32 %v1970, %v1970
      %v2072 = vmul.f32 %v1971, %v1971
      %v2073 = vmul.f32 %v1972, %v1972
      %v2074 = vmul.f32 %v1973, %v1973
      %v2075 = vmul.f32 %v1974, %v1974
      %v2076 = vadd.f32 %v2044, %v2045
      %v2077 = vadd.f32 %v2076, %v2046
      %v2078 = vadd.f32 %v2077, %v2047
      %v2079 = vadd.f32 %v2078, %v2048
      %v2080 = vadd.f32 %v2079, %v2049
      %v2081 = vadd.f32 %v2080, %v2050
      %v2082 = vadd.f32 %v2081, %v2051
      %v2083 = vadd.f32 %v2082, %v2052
      %v2084 = vadd.f32 %v2083, %v2053
      %v2085 = vadd.f32 %v2084, %v2054
      %v2086 = vadd.f32 %v2085, %v2055
      %v2087 = vadd.f32 %v2086, %v2056
      %v2088 = vadd.f32 %v2087, %v2057
      %v2089 = vadd.f32 %v2088, %v2058
      %v2090 = vadd.f32 %v2089, %v2059
      %v2091 = vadd.f32 %v2090, %v2060
      %v2092 = vadd.f32 %v2091, %v2061
      %v2093 = vadd.f32 %v2092, %v2062
      %v2094 = vadd.f32 %v2093, %v2063
      %v2095 = vadd.f32 %v2094, %v2064
      %v2096 = vadd.f32 %v2095, %v2065
      %v2097 = vadd.f32 %v2096, %v2066
      %v2098 = vadd.f32 %v2097, %v2067
      %v2099 = vadd.f32 %v2098, %v2068
      %v2100 = vadd.f32 %v2099, %v2069
      %v2101 = vadd.f32 %v2100, %v2070
      %v2102 = vadd.f32 %v2101, %v2071
      %v2103 = vadd.f32 %v2102, %v2072
      %v2104 = vadd.f32 %v2103, %v2073
      %v2105 = vadd.f32 %v2104, %v2074
      %v2106 = vadd.f32 %v2105, %v2075
      %v2107 = vrot.slane %v2106, 4
      %v2108 = vadd.f32 %v2106, %v2107
      %v2109 = vrot.slane %v2108, 2
      %v2110 = vadd.f32 %v2108, %v2109
      %v2111 = vrot.slane %v2110, 1
      %v2112 = vadd.f32 %v2110, %v2111
      %v2115 = vrot.slane %v2112, 7
      %vm2116 = vcmask 1040384
      %v2117 = vsel %vm2116, %v2043, %v2115
      %v2119 = vlaneseq
      %vm2120 = vcmp.ge.s32.totalorder %v2119, 0
      %vm2121 = vcmp.lt.s32.totalorder %v2119, 256
      %vm2122 = vmand %vm2120, %vm2121
      %2123 = vst.msk [vmem:[%s181] sm:$0x3] %vm2122, %v2117
      %p2124 = scmp.lt.s32.totalorder %s15, 1
      %s2125 = scalar_select %p2124, %s15, 1
      %s2126 = smul.addr %s2125, 32
      %s2127 = smul.addr %s2126, 8
      %s2128 = scalar_lea.vmem %s2, %s2127
      %p2129 = scmp.lt.s32.totalorder %s15, 1
      %s2130 = scalar_select %p2129, %s15, 1
      %s2131 = smul.addr %s2130, 2
      %s2132 = scalar_lea.vmem %s3, %s2131
      // Predicated region
      $region29: #{conv2d_block_forward.2} parent=27 // pred_check
        %p2133 = pneg %p80
      $region30: #{conv2d_block_forward.2} parent=27 // pred_check_branch
        %2135 = sbr.rel (%p2133) target = $region32
      $region31: #{conv2d_block_forward.2} parent=27 // pred_region
        _
      $region32: #{conv2d_block_forward.2} parent=27 // pred_fallthru
        _
      // Predicated region
      $region33: #{conv2d_block_forward.2} parent=27 // pred_check
        %p2136 = pneg %p106
      $region34: #{conv2d_block_forward.2} parent=27 // pred_check_branch
        %2138 = sbr.rel (%p2136) target = $region36
      $region35: #{conv2d_block_forward.2} parent=27 // pred_region
        _
      $region36: #{conv2d_block_forward.2} parent=27 // pred_fallthru
        _
    $region28: #{conv2d_block_forward.2} parent=5 // pred_fallthru
      _
    %p2139 = scmp.le.s32.totalorder 2, %s10
    // Predicated region
    $region37: #{conv2d_block_forward.2} parent=5 // pred_check
      %p2140 = pneg %p2139
    $region38: #{conv2d_block_forward.2} parent=5 // pred_check_branch
      %2142 = sbr.rel (%p2140) target = $region40
    $region39: #{conv2d_block_forward.2} parent=5 // pred_region
      %s2143 = ssub.s32 %s10, 2
      // Predicated region
      $region41: #{conv2d_block_forward.2} parent=39 // pred_check
        %p2144 = pneg %p86
      $region42: #{conv2d_block_forward.2} parent=39 // pred_check_branch
        %2146 = sbr.rel (%p2144) target = $region44
      $region43: #{conv2d_block_forward.2} parent=39 // pred_region
        %p2147 = scmp.lt.s32.totalorder %s16, 1
        %s2148 = scalar_select %p2147, %s16, 1
        %s2149 = smul.addr %s2148, 32
        %s2150 = smul.addr %s2149, 8
        %s2151 = scalar_lea.vmem %s2, %s2150
      $region44: #{conv2d_block_forward.2} parent=39 // pred_fallthru
        _
      // Predicated region
      $region45: #{conv2d_block_forward.2} parent=39 // pred_check
        %p2152 = pneg %p112
      $region46: #{conv2d_block_forward.2} parent=39 // pred_check_branch
        %2154 = sbr.rel (%p2152) target = $region48
      $region47: #{conv2d_block_forward.2} parent=39 // pred_region
        %p2155 = scmp.lt.s32.totalorder %s16, 1
        %s2156 = scalar_select %p2155, %s16, 1
        %s2157 = smul.addr %s2156, 2
        %s2158 = scalar_lea.vmem %s3, %s2157
      $region48: #{conv2d_block_forward.2} parent=39 // pred_fallthru
        _
    $region40: #{conv2d_block_forward.2} parent=5 // pred_fallthru
      _
  $region6: #{conv2d_block_forward.2} parent=0 // loop_footer
    %s14 = sadd.s32 1, %s10
  $region7: #{conv2d_block_forward.2} parent=0 // loop_footer_branch
    %9 = sbr.rel target = $region3
  $region8: #{conv2d_block_forward.2} parent=0 // loop_exit
    _

</llo_original>
